<compile_context>
chip_gen: v5e
topology: v5e:2x2
jax: 0.10.0
libtpu: 0.0.40
codegen_flags: <defaults>
</compile_context>

<pallas_src>
import functools

import numpy as np

import jax
import jax.numpy as jnp
from jax.experimental import pallas as pl
from jax.experimental.pallas import tpu as pltpu

EPS = 1e-5


def _dag_kernel(*refs, gb, tn, masked):
    """One grid step = `gb` whole graphs, `tn` node-slots each.

    refs (masked=False): x[BLK,F], w_in[F,H], b_in[1,H], w_out[H,C], b_out[1,C],
                         out[BLK,C]                       with BLK = gb*tn
    refs (masked=True):  counts (SMEM int32 [Bp]) prepended (scalar prefetch).

    Padded / dummy node slots produce finite garbage logits; the wrapper never
    reads them back (it gathers only real node rows).
    """
    if masked:
        counts_ref, x_ref, w_in_ref, b_in_ref, w_out_ref, b_out_ref, out_ref = refs
    else:
        x_ref, w_in_ref, b_in_ref, w_out_ref, b_out_ref, out_ref = refs
        counts_ref = None

    f = x_ref.shape[1]

    # Weights / biases into vregs once per block (not once per graph).
    w_in = w_in_ref[...]       # [F, H]
    b_in = b_in_ref[...]       # [1, H]
    w_out = w_out_ref[...]     # [H, C]
    b_out = b_out_ref[...]     # [1, C]
    x = x_ref[...]             # [gb*tn, F]  (already f32 -- no cast)

    inv_tn = 1.0 / float(tn)
    base = pl.program_id(0) * gb

    for g in range(gb):                          # static unroll, gb is small
        xg = x[g * tn:(g + 1) * tn, :]           # [tn, F] sublane-aligned view
        pivot = xg[0:1, :]                       # per-graph shift row (numerics)
        d = xg - pivot

        if masked:
            cnt = counts_ref[base + g]                           # int32 scalar (SMEM)
            row = jax.lax.broadcasted_iota(jnp.int32, (tn, f), 0)
            d = jnp.where(row < cnt, d, 0.0)                     # zero invalid slots
            invc = 1.0 / jnp.maximum(cnt.astype(jnp.float32), 1.0)
        else:
            invc = inv_tn                                        # uniform: constant 1/tn

        # ---- InstanceNorm: shifted single-pass stats (biased variance) ----
        s1 = jnp.sum(d, axis=0, keepdims=True)                   # [1, F]
        s2 = jnp.sum(d * d, axis=0, keepdims=True)               # [1, F]
        mean_d = s1 * invc
        var = jnp.maximum(s2 * invc - mean_d * mean_d, 0.0)
        invstd = jax.lax.rsqrt(var + EPS)                        # [1, F]

        # normalized operand built in-register and fed straight to the MXU
        xn = (d - mean_d) * invstd                               # [tn, F]

        # ---- lin_in + ReLU ----
        h = jnp.maximum(
            jnp.dot(xn, w_in, preferred_element_type=jnp.float32) + b_in, 0.0)

        # (conv layers: empty ModuleList for l_type='relu' -- nothing to apply)

        # ---- lin_Out: [tn, C] store (C == full last dim, no lane padding) ----
        out_ref[pl.ds(g * tn, tn), :] = (
            jnp.dot(h, w_out, preferred_element_type=jnp.float32) + b_out)


def _build_pallas_fn(F, H, C, GB, TN, steps, masked):
    BLK = GB * TN
    kernel = functools.partial(_dag_kernel, gb=GB, tn=TN, masked=masked)

    def tile(i, *_):   # node-tile blocks (ignores scalar-prefetch refs)
        return (i, 0)

    def whole(i, *_):  # weights / biases, resident across the grid
        return (0, 0)

    return pl.pallas_call(
        kernel,
        out_shape=jax.ShapeDtypeStruct((steps * BLK, C), jnp.float32),
        grid_spec=pltpu.PrefetchScalarGridSpec(
            num_scalar_prefetch=1 if masked else 0,   # per-graph counts -> SMEM
            grid=(steps,),
            in_specs=[
                pl.BlockSpec((BLK, F), tile),   # x slots
                pl.BlockSpec((F, H), whole),    # w_in
                pl.BlockSpec((1, H), whole),    # b_in
                pl.BlockSpec((H, C), whole),    # w_out (true num_classes, unpadded)
                pl.BlockSpec((1, C), whole),    # b_out
            ],
            out_specs=pl.BlockSpec((BLK, C), tile),   # unpadded logits
        ),
        compiler_params=pltpu.CompilerParams(
            dimension_semantics=("parallel",),        # node-tiles independent
        ),
    )


def _build_layout(batch, num_graphs, graphs_per_block=None):
    """Host-side, one-time analysis of the batch structure.

    Contract: `batch` must be concrete (host-available) and sorted/contiguous.
    """
    batch_np = np.asarray(batch)
    n_nodes = int(batch_np.shape[0])
    assert np.all(np.diff(batch_np) >= 0), "batch must be sorted/contiguous"
    B = int(num_graphs)
    counts = np.bincount(batch_np, minlength=B).astype(np.int64)[:B]
    TN = ((max(int(counts.max()), 1) + 7) // 8) * 8        # sublane-aligned slots

    if graphs_per_block is None:
        # Default: a 2-step "parallel" grid (one step per v7x TensorCore) with
        # the largest possible block per step; on v5e/v6e (1 TC) the second
        # step simply runs back-to-back.
        GB = max((B + 1) // 2, 1)
    else:
        GB = max(min(int(graphs_per_block), B), 1)
    steps = -(-B // GB)                                     # ceil
    Bp = steps * GB                                         # pad with dummy graphs

    offsets = np.zeros(B, dtype=np.int64)
    offsets[1:] = np.cumsum(counts)[:-1]

    # Fast path: every graph already fills exactly TN contiguous rows.
    identity = bool(np.all(counts == TN)) and (Bp == B)

    layout = dict(B=B, Bp=Bp, GB=GB, TN=TN, steps=steps, identity=identity)
    if not identity:
        # slot -> source-row gather: padded slots reuse the graph's first row,
        # dummy graphs use row 0 (their outputs are never read back).
        slot = np.arange(TN)[None, :]
        clamped = np.minimum(slot, np.maximum(counts, 1)[:, None] - 1)
        src = np.zeros((Bp, TN), dtype=np.int64)
        src[:B] = offsets[:, None] + clamped
        layout["gather_idx"] = jnp.asarray(src.reshape(-1).astype(np.int32))
        # node -> slot restore index (back to original node order)
        flat = batch_np.astype(np.int64) * TN + (np.arange(n_nodes) - offsets[batch_np])
        layout["restore_idx"] = jnp.asarray(flat.astype(np.int32))
        cpad = np.zeros(Bp, dtype=np.int32)
        cpad[:B] = counts
        layout["counts"] = jnp.asarray(cpad)
    return layout


def build_dag_forward(params, batch, num_graphs, graphs_per_block=None):
    """One-time setup (host layout work + jitted device core).

    Returns forward(x, pick_able) -> logits[pick_able]  (num_classes wide).
    """
    w_in, b_in, w_out, b_out = params
    F, H = int(w_in.shape[0]), int(w_in.shape[1])
    C = int(w_out.shape[1])

    lay = _build_layout(batch, num_graphs, graphs_per_block)
    GB, TN, steps = lay["GB"], lay["TN"], lay["steps"]
    masked = not lay["identity"]

    w_in_d = jnp.asarray(w_in, jnp.float32)
    b_in_d = jnp.asarray(b_in, jnp.float32).reshape(1, H)
    w_out_d = jnp.asarray(w_out, jnp.float32)
    b_out_d = jnp.asarray(b_out, jnp.float32).reshape(1, C)

    pallas_fn = _build_pallas_fn(F, H, C, GB, TN, steps, masked)

    if masked:
        counts_d = lay["counts"]
        gather_idx = lay["gather_idx"]
        restore_idx = lay["restore_idx"]

        # TODO(synk): the pre-kernel slot gather could be removed entirely by
        # scalar-prefetching per-graph row offsets and fetching each graph's
        # rows straight from HBM via a data-dependent index_map.
        @jax.jit
        def core(x):
            x = x.astype(jnp.float32)
            x_slots = x[gather_idx]          # lay nodes out in per-graph slots
            out = pallas_fn(counts_d, x_slots, w_in_d, b_in_d, w_out_d, b_out_d)
            return out[restore_idx]          # back to original node order
    else:
        @jax.jit
        def core(x):
            return pallas_fn(x.astype(jnp.float32),
                             w_in_d, b_in_d, w_out_d, b_out_d)

    def forward(x, pick_able):
        logits = core(x)
        # x = x[data.pickAble]: data-dependent-shape boolean gather stays
        # outside the kernel / jit (applied on the C-wide logits).
        return logits[pick_able]

    return forward


def reference_forward(x, batch, pick_able, params, num_graphs):
    """Pure-JAX reference (centered two-pass variance, f32-precision dots)."""
    w_in, b_in, w_out, b_out = params
    hp = jax.lax.Precision.HIGHEST
    g = (batch[None, :] == jnp.arange(num_graphs)[:, None]).astype(jnp.float32)
    counts = jnp.maximum(g.sum(1, keepdims=True), 1.0)
    mean = jnp.matmul(g, x, precision=hp) / counts
    xc = x - jnp.matmul(g.T, mean, precision=hp)
    var = jnp.matmul(g, xc * xc, precision=hp) / counts
    xn = xc * jax.lax.rsqrt(jnp.matmul(g.T, var, precision=hp) + EPS)
    h = jnp.maximum(jnp.matmul(xn, w_in, precision=hp) + b_in, 0.0)
    out = jnp.matmul(h, w_out, precision=hp) + b_out
    return out[pick_able]


if __name__ == "__main__":
    # Module defaults: num_features=10, hidden_channels=20, num_classes=2
    num_features, hidden_channels, num_classes = 10, 20, 2

    key = jax.random.PRNGKey(0)
    k_win, k_bin, k_wout, k_bout, k_x1, k_p1, k_x2, k_p2 = jax.random.split(key, 8)

    # Deterministic parameter init (PyTorch Linear-style uniform bounds)
    bound_in = 1.0 / (num_features ** 0.5)
    w_in = jax.random.uniform(k_win, (num_features, hidden_channels),
                              minval=-bound_in, maxval=bound_in, dtype=jnp.float32)
    b_in = jax.random.uniform(k_bin, (hidden_channels,),
                              minval=-bound_in, maxval=bound_in, dtype=jnp.float32)
    bound_out = 1.0 / (hidden_channels ** 0.5)
    w_out = jax.random.uniform(k_wout, (hidden_channels, num_classes),
                               minval=-bound_out, maxval=bound_out, dtype=jnp.float32)
    b_out = jax.random.uniform(k_bout, (num_classes,),
                               minval=-bound_out, maxval=bound_out, dtype=jnp.float32)
    params = (w_in, b_in, w_out, b_out)

    # ---- test 1: uniform batch (fast path: identity layout, no SMEM input,
    #      2 "parallel" grid steps x 512 nodes) ----
    B1, per = 16, 64                             # 1024 nodes total
    x1 = jax.random.normal(k_x1, (B1 * per, num_features), dtype=jnp.float32)
    batch1 = jnp.repeat(jnp.arange(B1, dtype=jnp.int32), per)
    pick1 = jax.random.bernoulli(k_p1, 0.5, (B1 * per,))

    fwd1 = build_dag_forward(params, batch1, B1)
    out1 = jax.block_until_ready(fwd1(x1, pick1))
    ref1 = reference_forward(x1, batch1, pick1, params, B1)
    assert out1.shape == ref1.shape == (int(pick1.sum()), num_classes)
    assert jnp.allclose(out1, ref1, atol=1e-4, rtol=1e-4), \
        float(jnp.max(jnp.abs(out1 - ref1)))

    # ---- test 2: ragged batch (masked path: counts via SMEM scalar prefetch),
    #      non-centered data exercising the shifted-stat numerics ----
    counts2 = np.array([40, 17, 8, 33, 24, 6], dtype=np.int64)
    B2, N2 = len(counts2), int(counts2.sum())
    x2 = jax.random.normal(k_x2, (N2, num_features), dtype=jnp.float32) + 5.0
    batch2 = jnp.asarray(np.repeat(np.arange(B2), counts2).astype(np.int32))
    pick2 = jax.random.bernoulli(k_p2, 0.5, (N2,))

    fwd2 = build_dag_forward(params, batch2, B2)
    out2 = jax.block_until_ready(fwd2(x2, pick2))
    ref2 = reference_forward(x2, batch2, pick2, params, B2)
    assert out2.shape == ref2.shape == (int(pick2.sum()), num_classes)
    assert jnp.allclose(out2, ref2, atol=1e-4, rtol=1e-4), \
        float(jnp.max(jnp.abs(out2 - ref2)))

    print("KERNEL_OK")
</pallas_src>

<mosaic_0001>
module attributes {stable_mosaic.version = 11 : i64} {
  func.func @_dag_kernel(%arg0: i32, %arg1: memref<512x10xf32, #tpu.memory_space<vmem>>, %arg2: memref<10x20xf32, #tpu.memory_space<vmem>>, %arg3: memref<1x20xf32, #tpu.memory_space<vmem>>, %arg4: memref<20x2xf32, #tpu.memory_space<vmem>>, %arg5: memref<1x2xf32, #tpu.memory_space<vmem>>, %arg6: memref<512x2xf32, #tpu.memory_space<vmem>>) attributes {dimension_semantics = [#tpu.dimension_semantics<parallel>], iteration_bounds = array<i64: 2>, scalar_prefetch = 0 : i64, scratch_operands = 0 : i64, tpu.core_type = #tpu.core_type<tc>, window_params = [{transform_indices = @transform_0, window_bounds = array<i64: 512, 10>}, {pipeline_mode = #tpu.pipeline_mode<synchronous>, transform_indices = @transform_1, window_bounds = array<i64: 10, 20>}, {pipeline_mode = #tpu.pipeline_mode<synchronous>, transform_indices = @transform_2, window_bounds = array<i64: 1, 20>}, {pipeline_mode = #tpu.pipeline_mode<synchronous>, transform_indices = @transform_3, window_bounds = array<i64: 20, 2>}, {pipeline_mode = #tpu.pipeline_mode<synchronous>, transform_indices = @transform_4, window_bounds = array<i64: 1, 2>}, {transform_indices = @transform_5, window_bounds = array<i64: 512, 2>}]} {
    %c0 = arith.constant 0 : index
    %c0_0 = arith.constant 0 : index
    %0 = vector.load %arg2[%c0, %c0_0] : memref<10x20xf32, #tpu.memory_space<vmem>>, vector<10x20xf32>
    %c0_1 = arith.constant 0 : index
    %c0_2 = arith.constant 0 : index
    %1 = vector.load %arg3[%c0_1, %c0_2] : memref<1x20xf32, #tpu.memory_space<vmem>>, vector<1x20xf32>
    %c0_3 = arith.constant 0 : index
    %c0_4 = arith.constant 0 : index
    %2 = vector.load %arg4[%c0_3, %c0_4] : memref<20x2xf32, #tpu.memory_space<vmem>>, vector<20x2xf32>
    %c0_5 = arith.constant 0 : index
    %c0_6 = arith.constant 0 : index
    %3 = vector.load %arg5[%c0_5, %c0_6] : memref<1x2xf32, #tpu.memory_space<vmem>>, vector<1x2xf32>
    %c0_7 = arith.constant 0 : index
    %c0_8 = arith.constant 0 : index
    %4 = vector.load %arg1[%c0_7, %c0_8] : memref<512x10xf32, #tpu.memory_space<vmem>>, vector<512x10xf32>
    %5 = vector.extract_strided_slice %4 {offsets = [0, 0], sizes = [64, 10], strides = [1, 1]} : vector<512x10xf32> to vector<64x10xf32>
    %6 = vector.extract_strided_slice %5 {offsets = [0, 0], sizes = [1, 10], strides = [1, 1]} : vector<64x10xf32> to vector<1x10xf32>
    %7 = vector.broadcast %6 : vector<1x10xf32> to vector<64x10xf32>
    %8 = arith.subf %5, %7 : vector<64x10xf32>
    %cst = arith.constant dense<0.000000e+00> : vector<10xf32>
    %9 = vector.multi_reduction <add>, %8, %cst [0] : vector<64x10xf32> to vector<10xf32>
    %10 = vector.shape_cast %9 : vector<10xf32> to vector<1x10xf32>
    %11 = arith.mulf %8, %8 : vector<64x10xf32>
    %cst_9 = arith.constant dense<0.000000e+00> : vector<10xf32>
    %12 = vector.multi_reduction <add>, %11, %cst_9 [0] : vector<64x10xf32> to vector<10xf32>
    %13 = vector.shape_cast %12 : vector<10xf32> to vector<1x10xf32>
    %cst_10 = arith.constant 1.562500e-02 : f32
    %14 = vector.broadcast %cst_10 : f32 to vector<1x10xf32>
    %15 = arith.mulf %10, %14 : vector<1x10xf32>
    %cst_11 = arith.constant 1.562500e-02 : f32
    %16 = vector.broadcast %cst_11 : f32 to vector<1x10xf32>
    %17 = arith.mulf %13, %16 : vector<1x10xf32>
    %18 = arith.mulf %15, %15 : vector<1x10xf32>
    %19 = arith.subf %17, %18 : vector<1x10xf32>
    %cst_12 = arith.constant 0.000000e+00 : f32
    %20 = vector.broadcast %cst_12 : f32 to vector<1x10xf32>
    %21 = arith.maximumf %19, %20 : vector<1x10xf32>
    %cst_13 = arith.constant 9.99999974E-6 : f32
    %22 = vector.broadcast %cst_13 : f32 to vector<1x10xf32>
    %23 = arith.addf %21, %22 : vector<1x10xf32>
    %24 = math.rsqrt %23 : vector<1x10xf32>
    %25 = vector.broadcast %15 : vector<1x10xf32> to vector<64x10xf32>
    %26 = arith.subf %8, %25 : vector<64x10xf32>
    %27 = vector.broadcast %24 : vector<1x10xf32> to vector<64x10xf32>
    %28 = arith.mulf %26, %27 : vector<64x10xf32>
    %cst_14 = arith.constant dense<0.000000e+00> : vector<64x20xf32>
    %29 = tpu.matmul %28, %0, %cst_14 {dimension_numbers = #tpu.dot_dimension_numbers<[1], [0], [0], [1], [0, 0, 1, 1], [], []>} : vector<64x10xf32>, vector<10x20xf32>, vector<64x20xf32> -> vector<64x20xf32>
    %30 = vector.broadcast %1 : vector<1x20xf32> to vector<64x20xf32>
    %31 = arith.addf %29, %30 : vector<64x20xf32>
    %cst_15 = arith.constant 0.000000e+00 : f32
    %32 = vector.broadcast %cst_15 : f32 to vector<64x20xf32>
    %33 = arith.maximumf %31, %32 : vector<64x20xf32>
    %cst_16 = arith.constant dense<0.000000e+00> : vector<64x2xf32>
    %34 = tpu.matmul %33, %2, %cst_16 {dimension_numbers = #tpu.dot_dimension_numbers<[1], [0], [0], [1], [0, 0, 1, 1], [], []>} : vector<64x20xf32>, vector<20x2xf32>, vector<64x2xf32> -> vector<64x2xf32>
    %35 = vector.broadcast %3 : vector<1x2xf32> to vector<64x2xf32>
    %36 = arith.addf %34, %35 : vector<64x2xf32>
    %c0_17 = arith.constant 0 : index
    %c0_18 = arith.constant 0 : index
    %37 = vector.load %arg6[%c0_17, %c0_18] : memref<512x2xf32, #tpu.memory_space<vmem>>, vector<64x2xf32>
    tpu.vector_store %arg6[%c0_17, %c0_18], %36 {strides = array<i32>} : memref<512x2xf32, #tpu.memory_space<vmem>>, vector<64x2xf32>,
    %38 = vector.extract_strided_slice %4 {offsets = [64, 0], sizes = [64, 10], strides = [1, 1]} : vector<512x10xf32> to vector<64x10xf32>
    %39 = vector.extract_strided_slice %38 {offsets = [0, 0], sizes = [1, 10], strides = [1, 1]} : vector<64x10xf32> to vector<1x10xf32>
    %40 = vector.broadcast %39 : vector<1x10xf32> to vector<64x10xf32>
    %41 = arith.subf %38, %40 : vector<64x10xf32>
    %cst_19 = arith.constant dense<0.000000e+00> : vector<10xf32>
    %42 = vector.multi_reduction <add>, %41, %cst_19 [0] : vector<64x10xf32> to vector<10xf32>
    %43 = vector.shape_cast %42 : vector<10xf32> to vector<1x10xf32>
    %44 = arith.mulf %41, %41 : vector<64x10xf32>
    %cst_20 = arith.constant dense<0.000000e+00> : vector<10xf32>
    %45 = vector.multi_reduction <add>, %44, %cst_20 [0] : vector<64x10xf32> to vector<10xf32>
    %46 = vector.shape_cast %45 : vector<10xf32> to vector<1x10xf32>
    %cst_21 = arith.constant 1.562500e-02 : f32
    %47 = vector.broadcast %cst_21 : f32 to vector<1x10xf32>
    %48 = arith.mulf %43, %47 : vector<1x10xf32>
    %cst_22 = arith.constant 1.562500e-02 : f32
    %49 = vector.broadcast %cst_22 : f32 to vector<1x10xf32>
    %50 = arith.mulf %46, %49 : vector<1x10xf32>
    %51 = arith.mulf %48, %48 : vector<1x10xf32>
    %52 = arith.subf %50, %51 : vector<1x10xf32>
    %cst_23 = arith.constant 0.000000e+00 : f32
    %53 = vector.broadcast %cst_23 : f32 to vector<1x10xf32>
    %54 = arith.maximumf %52, %53 : vector<1x10xf32>
    %cst_24 = arith.constant 9.99999974E-6 : f32
    %55 = vector.broadcast %cst_24 : f32 to vector<1x10xf32>
    %56 = arith.addf %54, %55 : vector<1x10xf32>
    %57 = math.rsqrt %56 : vector<1x10xf32>
    %58 = vector.broadcast %48 : vector<1x10xf32> to vector<64x10xf32>
    %59 = arith.subf %41, %58 : vector<64x10xf32>
    %60 = vector.broadcast %57 : vector<1x10xf32> to vector<64x10xf32>
    %61 = arith.mulf %59, %60 : vector<64x10xf32>
    %cst_25 = arith.constant dense<0.000000e+00> : vector<64x20xf32>
    %62 = tpu.matmul %61, %0, %cst_25 {dimension_numbers = #tpu.dot_dimension_numbers<[1], [0], [0], [1], [0, 0, 1, 1], [], []>} : vector<64x10xf32>, vector<10x20xf32>, vector<64x20xf32> -> vector<64x20xf32>
    %63 = vector.broadcast %1 : vector<1x20xf32> to vector<64x20xf32>
    %64 = arith.addf %62, %63 : vector<64x20xf32>
    %cst_26 = arith.constant 0.000000e+00 : f32
    %65 = vector.broadcast %cst_26 : f32 to vector<64x20xf32>
    %66 = arith.maximumf %64, %65 : vector<64x20xf32>
    %cst_27 = arith.constant dense<0.000000e+00> : vector<64x2xf32>
    %67 = tpu.matmul %66, %2, %cst_27 {dimension_numbers = #tpu.dot_dimension_numbers<[1], [0], [0], [1], [0, 0, 1, 1], [], []>} : vector<64x20xf32>, vector<20x2xf32>, vector<64x2xf32> -> vector<64x2xf32>
    %68 = vector.broadcast %3 : vector<1x2xf32> to vector<64x2xf32>
    %69 = arith.addf %67, %68 : vector<64x2xf32>
    %c64 = arith.constant 64 : index
    %c0_28 = arith.constant 0 : index
    %70 = vector.load %arg6[%c64, %c0_28] : memref<512x2xf32, #tpu.memory_space<vmem>>, vector<64x2xf32>
    tpu.vector_store %arg6[%c64, %c0_28], %69 {strides = array<i32>} : memref<512x2xf32, #tpu.memory_space<vmem>>, vector<64x2xf32>,
    %71 = vector.extract_strided_slice %4 {offsets = [128, 0], sizes = [64, 10], strides = [1, 1]} : vector<512x10xf32> to vector<64x10xf32>
    %72 = vector.extract_strided_slice %71 {offsets = [0, 0], sizes = [1, 10], strides = [1, 1]} : vector<64x10xf32> to vector<1x10xf32>
    %73 = vector.broadcast %72 : vector<1x10xf32> to vector<64x10xf32>
    %74 = arith.subf %71, %73 : vector<64x10xf32>
    %cst_29 = arith.constant dense<0.000000e+00> : vector<10xf32>
    %75 = vector.multi_reduction <add>, %74, %cst_29 [0] : vector<64x10xf32> to vector<10xf32>
    %76 = vector.shape_cast %75 : vector<10xf32> to vector<1x10xf32>
    %77 = arith.mulf %74, %74 : vector<64x10xf32>
    %cst_30 = arith.constant dense<0.000000e+00> : vector<10xf32>
    %78 = vector.multi_reduction <add>, %77, %cst_30 [0] : vector<64x10xf32> to vector<10xf32>
    %79 = vector.shape_cast %78 : vector<10xf32> to vector<1x10xf32>
    %cst_31 = arith.constant 1.562500e-02 : f32
    %80 = vector.broadcast %cst_31 : f32 to vector<1x10xf32>
    %81 = arith.mulf %76, %80 : vector<1x10xf32>
    %cst_32 = arith.constant 1.562500e-02 : f32
    %82 = vector.broadcast %cst_32 : f32 to vector<1x10xf32>
    %83 = arith.mulf %79, %82 : vector<1x10xf32>
    %84 = arith.mulf %81, %81 : vector<1x10xf32>
    %85 = arith.subf %83, %84 : vector<1x10xf32>
    %cst_33 = arith.constant 0.000000e+00 : f32
    %86 = vector.broadcast %cst_33 : f32 to vector<1x10xf32>
    %87 = arith.maximumf %85, %86 : vector<1x10xf32>
    %cst_34 = arith.constant 9.99999974E-6 : f32
    %88 = vector.broadcast %cst_34 : f32 to vector<1x10xf32>
    %89 = arith.addf %87, %88 : vector<1x10xf32>
    %90 = math.rsqrt %89 : vector<1x10xf32>
    %91 = vector.broadcast %81 : vector<1x10xf32> to vector<64x10xf32>
    %92 = arith.subf %74, %91 : vector<64x10xf32>
    %93 = vector.broadcast %90 : vector<1x10xf32> to vector<64x10xf32>
    %94 = arith.mulf %92, %93 : vector<64x10xf32>
    %cst_35 = arith.constant dense<0.000000e+00> : vector<64x20xf32>
    %95 = tpu.matmul %94, %0, %cst_35 {dimension_numbers = #tpu.dot_dimension_numbers<[1], [0], [0], [1], [0, 0, 1, 1], [], []>} : vector<64x10xf32>, vector<10x20xf32>, vector<64x20xf32> -> vector<64x20xf32>
    %96 = vector.broadcast %1 : vector<1x20xf32> to vector<64x20xf32>
    %97 = arith.addf %95, %96 : vector<64x20xf32>
    %cst_36 = arith.constant 0.000000e+00 : f32
    %98 = vector.broadcast %cst_36 : f32 to vector<64x20xf32>
    %99 = arith.maximumf %97, %98 : vector<64x20xf32>
    %cst_37 = arith.constant dense<0.000000e+00> : vector<64x2xf32>
    %100 = tpu.matmul %99, %2, %cst_37 {dimension_numbers = #tpu.dot_dimension_numbers<[1], [0], [0], [1], [0, 0, 1, 1], [], []>} : vector<64x20xf32>, vector<20x2xf32>, vector<64x2xf32> -> vector<64x2xf32>
    %101 = vector.broadcast %3 : vector<1x2xf32> to vector<64x2xf32>
    %102 = arith.addf %100, %101 : vector<64x2xf32>
    %c128 = arith.constant 128 : index
    %c0_38 = arith.constant 0 : index
    %103 = vector.load %arg6[%c128, %c0_38] : memref<512x2xf32, #tpu.memory_space<vmem>>, vector<64x2xf32>
    tpu.vector_store %arg6[%c128, %c0_38], %102 {strides = array<i32>} : memref<512x2xf32, #tpu.memory_space<vmem>>, vector<64x2xf32>,
    %104 = vector.extract_strided_slice %4 {offsets = [192, 0], sizes = [64, 10], strides = [1, 1]} : vector<512x10xf32> to vector<64x10xf32>
    %105 = vector.extract_strided_slice %104 {offsets = [0, 0], sizes = [1, 10], strides = [1, 1]} : vector<64x10xf32> to vector<1x10xf32>
    %106 = vector.broadcast %105 : vector<1x10xf32> to vector<64x10xf32>
    %107 = arith.subf %104, %106 : vector<64x10xf32>
    %cst_39 = arith.constant dense<0.000000e+00> : vector<10xf32>
    %108 = vector.multi_reduction <add>, %107, %cst_39 [0] : vector<64x10xf32> to vector<10xf32>
    %109 = vector.shape_cast %108 : vector<10xf32> to vector<1x10xf32>
    %110 = arith.mulf %107, %107 : vector<64x10xf32>
    %cst_40 = arith.constant dense<0.000000e+00> : vector<10xf32>
    %111 = vector.multi_reduction <add>, %110, %cst_40 [0] : vector<64x10xf32> to vector<10xf32>
    %112 = vector.shape_cast %111 : vector<10xf32> to vector<1x10xf32>
    %cst_41 = arith.constant 1.562500e-02 : f32
    %113 = vector.broadcast %cst_41 : f32 to vector<1x10xf32>
    %114 = arith.mulf %109, %113 : vector<1x10xf32>
    %cst_42 = arith.constant 1.562500e-02 : f32
    %115 = vector.broadcast %cst_42 : f32 to vector<1x10xf32>
    %116 = arith.mulf %112, %115 : vector<1x10xf32>
    %117 = arith.mulf %114, %114 : vector<1x10xf32>
    %118 = arith.subf %116, %117 : vector<1x10xf32>
    %cst_43 = arith.constant 0.000000e+00 : f32
    %119 = vector.broadcast %cst_43 : f32 to vector<1x10xf32>
    %120 = arith.maximumf %118, %119 : vector<1x10xf32>
    %cst_44 = arith.constant 9.99999974E-6 : f32
    %121 = vector.broadcast %cst_44 : f32 to vector<1x10xf32>
    %122 = arith.addf %120, %121 : vector<1x10xf32>
    %123 = math.rsqrt %122 : vector<1x10xf32>
    %124 = vector.broadcast %114 : vector<1x10xf32> to vector<64x10xf32>
    %125 = arith.subf %107, %124 : vector<64x10xf32>
    %126 = vector.broadcast %123 : vector<1x10xf32> to vector<64x10xf32>
    %127 = arith.mulf %125, %126 : vector<64x10xf32>
    %cst_45 = arith.constant dense<0.000000e+00> : vector<64x20xf32>
    %128 = tpu.matmul %127, %0, %cst_45 {dimension_numbers = #tpu.dot_dimension_numbers<[1], [0], [0], [1], [0, 0, 1, 1], [], []>} : vector<64x10xf32>, vector<10x20xf32>, vector<64x20xf32> -> vector<64x20xf32>
    %129 = vector.broadcast %1 : vector<1x20xf32> to vector<64x20xf32>
    %130 = arith.addf %128, %129 : vector<64x20xf32>
    %cst_46 = arith.constant 0.000000e+00 : f32
    %131 = vector.broadcast %cst_46 : f32 to vector<64x20xf32>
    %132 = arith.maximumf %130, %131 : vector<64x20xf32>
    %cst_47 = arith.constant dense<0.000000e+00> : vector<64x2xf32>
    %133 = tpu.matmul %132, %2, %cst_47 {dimension_numbers = #tpu.dot_dimension_numbers<[1], [0], [0], [1], [0, 0, 1, 1], [], []>} : vector<64x20xf32>, vector<20x2xf32>, vector<64x2xf32> -> vector<64x2xf32>
    %134 = vector.broadcast %3 : vector<1x2xf32> to vector<64x2xf32>
    %135 = arith.addf %133, %134 : vector<64x2xf32>
    %c192 = arith.constant 192 : index
    %c0_48 = arith.constant 0 : index
    %136 = vector.load %arg6[%c192, %c0_48] : memref<512x2xf32, #tpu.memory_space<vmem>>, vector<64x2xf32>
    tpu.vector_store %arg6[%c192, %c0_48], %135 {strides = array<i32>} : memref<512x2xf32, #tpu.memory_space<vmem>>, vector<64x2xf32>,
    %137 = vector.extract_strided_slice %4 {offsets = [256, 0], sizes = [64, 10], strides = [1, 1]} : vector<512x10xf32> to vector<64x10xf32>
    %138 = vector.extract_strided_slice %137 {offsets = [0, 0], sizes = [1, 10], strides = [1, 1]} : vector<64x10xf32> to vector<1x10xf32>
    %139 = vector.broadcast %138 : vector<1x10xf32> to vector<64x10xf32>
    %140 = arith.subf %137, %139 : vector<64x10xf32>
    %cst_49 = arith.constant dense<0.000000e+00> : vector<10xf32>
    %141 = vector.multi_reduction <add>, %140, %cst_49 [0] : vector<64x10xf32> to vector<10xf32>
    %142 = vector.shape_cast %141 : vector<10xf32> to vector<1x10xf32>
    %143 = arith.mulf %140, %140 : vector<64x10xf32>
    %cst_50 = arith.constant dense<0.000000e+00> : vector<10xf32>
    %144 = vector.multi_reduction <add>, %143, %cst_50 [0] : vector<64x10xf32> to vector<10xf32>
    %145 = vector.shape_cast %144 : vector<10xf32> to vector<1x10xf32>
    %cst_51 = arith.constant 1.562500e-02 : f32
    %146 = vector.broadcast %cst_51 : f32 to vector<1x10xf32>
    %147 = arith.mulf %142, %146 : vector<1x10xf32>
    %cst_52 = arith.constant 1.562500e-02 : f32
    %148 = vector.broadcast %cst_52 : f32 to vector<1x10xf32>
    %149 = arith.mulf %145, %148 : vector<1x10xf32>
    %150 = arith.mulf %147, %147 : vector<1x10xf32>
    %151 = arith.subf %149, %150 : vector<1x10xf32>
    %cst_53 = arith.constant 0.000000e+00 : f32
    %152 = vector.broadcast %cst_53 : f32 to vector<1x10xf32>
    %153 = arith.maximumf %151, %152 : vector<1x10xf32>
    %cst_54 = arith.constant 9.99999974E-6 : f32
    %154 = vector.broadcast %cst_54 : f32 to vector<1x10xf32>
    %155 = arith.addf %153, %154 : vector<1x10xf32>
    %156 = math.rsqrt %155 : vector<1x10xf32>
    %157 = vector.broadcast %147 : vector<1x10xf32> to vector<64x10xf32>
    %158 = arith.subf %140, %157 : vector<64x10xf32>
    %159 = vector.broadcast %156 : vector<1x10xf32> to vector<64x10xf32>
    %160 = arith.mulf %158, %159 : vector<64x10xf32>
    %cst_55 = arith.constant dense<0.000000e+00> : vector<64x20xf32>
    %161 = tpu.matmul %160, %0, %cst_55 {dimension_numbers = #tpu.dot_dimension_numbers<[1], [0], [0], [1], [0, 0, 1, 1], [], []>} : vector<64x10xf32>, vector<10x20xf32>, vector<64x20xf32> -> vector<64x20xf32>
    %162 = vector.broadcast %1 : vector<1x20xf32> to vector<64x20xf32>
    %163 = arith.addf %161, %162 : vector<64x20xf32>
    %cst_56 = arith.constant 0.000000e+00 : f32
    %164 = vector.broadcast %cst_56 : f32 to vector<64x20xf32>
    %165 = arith.maximumf %163, %164 : vector<64x20xf32>
    %cst_57 = arith.constant dense<0.000000e+00> : vector<64x2xf32>
    %166 = tpu.matmul %165, %2, %cst_57 {dimension_numbers = #tpu.dot_dimension_numbers<[1], [0], [0], [1], [0, 0, 1, 1], [], []>} : vector<64x20xf32>, vector<20x2xf32>, vector<64x2xf32> -> vector<64x2xf32>
    %167 = vector.broadcast %3 : vector<1x2xf32> to vector<64x2xf32>
    %168 = arith.addf %166, %167 : vector<64x2xf32>
    %c256 = arith.constant 256 : index
    %c0_58 = arith.constant 0 : index
    %169 = vector.load %arg6[%c256, %c0_58] : memref<512x2xf32, #tpu.memory_space<vmem>>, vector<64x2xf32>
    tpu.vector_store %arg6[%c256, %c0_58], %168 {strides = array<i32>} : memref<512x2xf32, #tpu.memory_space<vmem>>, vector<64x2xf32>,
    %170 = vector.extract_strided_slice %4 {offsets = [320, 0], sizes = [64, 10], strides = [1, 1]} : vector<512x10xf32> to vector<64x10xf32>
    %171 = vector.extract_strided_slice %170 {offsets = [0, 0], sizes = [1, 10], strides = [1, 1]} : vector<64x10xf32> to vector<1x10xf32>
    %172 = vector.broadcast %171 : vector<1x10xf32> to vector<64x10xf32>
    %173 = arith.subf %170, %172 : vector<64x10xf32>
    %cst_59 = arith.constant dense<0.000000e+00> : vector<10xf32>
    %174 = vector.multi_reduction <add>, %173, %cst_59 [0] : vector<64x10xf32> to vector<10xf32>
    %175 = vector.shape_cast %174 : vector<10xf32> to vector<1x10xf32>
    %176 = arith.mulf %173, %173 : vector<64x10xf32>
    %cst_60 = arith.constant dense<0.000000e+00> : vector<10xf32>
    %177 = vector.multi_reduction <add>, %176, %cst_60 [0] : vector<64x10xf32> to vector<10xf32>
    %178 = vector.shape_cast %177 : vector<10xf32> to vector<1x10xf32>
    %cst_61 = arith.constant 1.562500e-02 : f32
    %179 = vector.broadcast %cst_61 : f32 to vector<1x10xf32>
    %180 = arith.mulf %175, %179 : vector<1x10xf32>
    %cst_62 = arith.constant 1.562500e-02 : f32
    %181 = vector.broadcast %cst_62 : f32 to vector<1x10xf32>
    %182 = arith.mulf %178, %181 : vector<1x10xf32>
    %183 = arith.mulf %180, %180 : vector<1x10xf32>
    %184 = arith.subf %182, %183 : vector<1x10xf32>
    %cst_63 = arith.constant 0.000000e+00 : f32
    %185 = vector.broadcast %cst_63 : f32 to vector<1x10xf32>
    %186 = arith.maximumf %184, %185 : vector<1x10xf32>
    %cst_64 = arith.constant 9.99999974E-6 : f32
    %187 = vector.broadcast %cst_64 : f32 to vector<1x10xf32>
    %188 = arith.addf %186, %187 : vector<1x10xf32>
    %189 = math.rsqrt %188 : vector<1x10xf32>
    %190 = vector.broadcast %180 : vector<1x10xf32> to vector<64x10xf32>
    %191 = arith.subf %173, %190 : vector<64x10xf32>
    %192 = vector.broadcast %189 : vector<1x10xf32> to vector<64x10xf32>
    %193 = arith.mulf %191, %192 : vector<64x10xf32>
    %cst_65 = arith.constant dense<0.000000e+00> : vector<64x20xf32>
    %194 = tpu.matmul %193, %0, %cst_65 {dimension_numbers = #tpu.dot_dimension_numbers<[1], [0], [0], [1], [0, 0, 1, 1], [], []>} : vector<64x10xf32>, vector<10x20xf32>, vector<64x20xf32> -> vector<64x20xf32>
    %195 = vector.broadcast %1 : vector<1x20xf32> to vector<64x20xf32>
    %196 = arith.addf %194, %195 : vector<64x20xf32>
    %cst_66 = arith.constant 0.000000e+00 : f32
    %197 = vector.broadcast %cst_66 : f32 to vector<64x20xf32>
    %198 = arith.maximumf %196, %197 : vector<64x20xf32>
    %cst_67 = arith.constant dense<0.000000e+00> : vector<64x2xf32>
    %199 = tpu.matmul %198, %2, %cst_67 {dimension_numbers = #tpu.dot_dimension_numbers<[1], [0], [0], [1], [0, 0, 1, 1], [], []>} : vector<64x20xf32>, vector<20x2xf32>, vector<64x2xf32> -> vector<64x2xf32>
    %200 = vector.broadcast %3 : vector<1x2xf32> to vector<64x2xf32>
    %201 = arith.addf %199, %200 : vector<64x2xf32>
    %c320 = arith.constant 320 : index
    %c0_68 = arith.constant 0 : index
    %202 = vector.load %arg6[%c320, %c0_68] : memref<512x2xf32, #tpu.memory_space<vmem>>, vector<64x2xf32>
    tpu.vector_store %arg6[%c320, %c0_68], %201 {strides = array<i32>} : memref<512x2xf32, #tpu.memory_space<vmem>>, vector<64x2xf32>,
    %203 = vector.extract_strided_slice %4 {offsets = [384, 0], sizes = [64, 10], strides = [1, 1]} : vector<512x10xf32> to vector<64x10xf32>
    %204 = vector.extract_strided_slice %203 {offsets = [0, 0], sizes = [1, 10], strides = [1, 1]} : vector<64x10xf32> to vector<1x10xf32>
    %205 = vector.broadcast %204 : vector<1x10xf32> to vector<64x10xf32>
    %206 = arith.subf %203, %205 : vector<64x10xf32>
    %cst_69 = arith.constant dense<0.000000e+00> : vector<10xf32>
    %207 = vector.multi_reduction <add>, %206, %cst_69 [0] : vector<64x10xf32> to vector<10xf32>
    %208 = vector.shape_cast %207 : vector<10xf32> to vector<1x10xf32>
    %209 = arith.mulf %206, %206 : vector<64x10xf32>
    %cst_70 = arith.constant dense<0.000000e+00> : vector<10xf32>
    %210 = vector.multi_reduction <add>, %209, %cst_70 [0] : vector<64x10xf32> to vector<10xf32>
    %211 = vector.shape_cast %210 : vector<10xf32> to vector<1x10xf32>
    %cst_71 = arith.constant 1.562500e-02 : f32
    %212 = vector.broadcast %cst_71 : f32 to vector<1x10xf32>
    %213 = arith.mulf %208, %212 : vector<1x10xf32>
    %cst_72 = arith.constant 1.562500e-02 : f32
    %214 = vector.broadcast %cst_72 : f32 to vector<1x10xf32>
    %215 = arith.mulf %211, %214 : vector<1x10xf32>
    %216 = arith.mulf %213, %213 : vector<1x10xf32>
    %217 = arith.subf %215, %216 : vector<1x10xf32>
    %cst_73 = arith.constant 0.000000e+00 : f32
    %218 = vector.broadcast %cst_73 : f32 to vector<1x10xf32>
    %219 = arith.maximumf %217, %218 : vector<1x10xf32>
    %cst_74 = arith.constant 9.99999974E-6 : f32
    %220 = vector.broadcast %cst_74 : f32 to vector<1x10xf32>
    %221 = arith.addf %219, %220 : vector<1x10xf32>
    %222 = math.rsqrt %221 : vector<1x10xf32>
    %223 = vector.broadcast %213 : vector<1x10xf32> to vector<64x10xf32>
    %224 = arith.subf %206, %223 : vector<64x10xf32>
    %225 = vector.broadcast %222 : vector<1x10xf32> to vector<64x10xf32>
    %226 = arith.mulf %224, %225 : vector<64x10xf32>
    %cst_75 = arith.constant dense<0.000000e+00> : vector<64x20xf32>
    %227 = tpu.matmul %226, %0, %cst_75 {dimension_numbers = #tpu.dot_dimension_numbers<[1], [0], [0], [1], [0, 0, 1, 1], [], []>} : vector<64x10xf32>, vector<10x20xf32>, vector<64x20xf32> -> vector<64x20xf32>
    %228 = vector.broadcast %1 : vector<1x20xf32> to vector<64x20xf32>
    %229 = arith.addf %227, %228 : vector<64x20xf32>
    %cst_76 = arith.constant 0.000000e+00 : f32
    %230 = vector.broadcast %cst_76 : f32 to vector<64x20xf32>
    %231 = arith.maximumf %229, %230 : vector<64x20xf32>
    %cst_77 = arith.constant dense<0.000000e+00> : vector<64x2xf32>
    %232 = tpu.matmul %231, %2, %cst_77 {dimension_numbers = #tpu.dot_dimension_numbers<[1], [0], [0], [1], [0, 0, 1, 1], [], []>} : vector<64x20xf32>, vector<20x2xf32>, vector<64x2xf32> -> vector<64x2xf32>
    %233 = vector.broadcast %3 : vector<1x2xf32> to vector<64x2xf32>
    %234 = arith.addf %232, %233 : vector<64x2xf32>
    %c384 = arith.constant 384 : index
    %c0_78 = arith.constant 0 : index
    %235 = vector.load %arg6[%c384, %c0_78] : memref<512x2xf32, #tpu.memory_space<vmem>>, vector<64x2xf32>
    tpu.vector_store %arg6[%c384, %c0_78], %234 {strides = array<i32>} : memref<512x2xf32, #tpu.memory_space<vmem>>, vector<64x2xf32>,
    %236 = vector.extract_strided_slice %4 {offsets = [448, 0], sizes = [64, 10], strides = [1, 1]} : vector<512x10xf32> to vector<64x10xf32>
    %237 = vector.extract_strided_slice %236 {offsets = [0, 0], sizes = [1, 10], strides = [1, 1]} : vector<64x10xf32> to vector<1x10xf32>
    %238 = vector.broadcast %237 : vector<1x10xf32> to vector<64x10xf32>
    %239 = arith.subf %236, %238 : vector<64x10xf32>
    %cst_79 = arith.constant dense<0.000000e+00> : vector<10xf32>
    %240 = vector.multi_reduction <add>, %239, %cst_79 [0] : vector<64x10xf32> to vector<10xf32>
    %241 = vector.shape_cast %240 : vector<10xf32> to vector<1x10xf32>
    %242 = arith.mulf %239, %239 : vector<64x10xf32>
    %cst_80 = arith.constant dense<0.000000e+00> : vector<10xf32>
    %243 = vector.multi_reduction <add>, %242, %cst_80 [0] : vector<64x10xf32> to vector<10xf32>
    %244 = vector.shape_cast %243 : vector<10xf32> to vector<1x10xf32>
    %cst_81 = arith.constant 1.562500e-02 : f32
    %245 = vector.broadcast %cst_81 : f32 to vector<1x10xf32>
    %246 = arith.mulf %241, %245 : vector<1x10xf32>
    %cst_82 = arith.constant 1.562500e-02 : f32
    %247 = vector.broadcast %cst_82 : f32 to vector<1x10xf32>
    %248 = arith.mulf %244, %247 : vector<1x10xf32>
    %249 = arith.mulf %246, %246 : vector<1x10xf32>
    %250 = arith.subf %248, %249 : vector<1x10xf32>
    %cst_83 = arith.constant 0.000000e+00 : f32
    %251 = vector.broadcast %cst_83 : f32 to vector<1x10xf32>
    %252 = arith.maximumf %250, %251 : vector<1x10xf32>
    %cst_84 = arith.constant 9.99999974E-6 : f32
    %253 = vector.broadcast %cst_84 : f32 to vector<1x10xf32>
    %254 = arith.addf %252, %253 : vector<1x10xf32>
    %255 = math.rsqrt %254 : vector<1x10xf32>
    %256 = vector.broadcast %246 : vector<1x10xf32> to vector<64x10xf32>
    %257 = arith.subf %239, %256 : vector<64x10xf32>
    %258 = vector.broadcast %255 : vector<1x10xf32> to vector<64x10xf32>
    %259 = arith.mulf %257, %258 : vector<64x10xf32>
    %cst_85 = arith.constant dense<0.000000e+00> : vector<64x20xf32>
    %260 = tpu.matmul %259, %0, %cst_85 {dimension_numbers = #tpu.dot_dimension_numbers<[1], [0], [0], [1], [0, 0, 1, 1], [], []>} : vector<64x10xf32>, vector<10x20xf32>, vector<64x20xf32> -> vector<64x20xf32>
    %261 = vector.broadcast %1 : vector<1x20xf32> to vector<64x20xf32>
    %262 = arith.addf %260, %261 : vector<64x20xf32>
    %cst_86 = arith.constant 0.000000e+00 : f32
    %263 = vector.broadcast %cst_86 : f32 to vector<64x20xf32>
    %264 = arith.maximumf %262, %263 : vector<64x20xf32>
    %cst_87 = arith.constant dense<0.000000e+00> : vector<64x2xf32>
    %265 = tpu.matmul %264, %2, %cst_87 {dimension_numbers = #tpu.dot_dimension_numbers<[1], [0], [0], [1], [0, 0, 1, 1], [], []>} : vector<64x20xf32>, vector<20x2xf32>, vector<64x2xf32> -> vector<64x2xf32>
    %266 = vector.broadcast %3 : vector<1x2xf32> to vector<64x2xf32>
    %267 = arith.addf %265, %266 : vector<64x2xf32>
    %c448 = arith.constant 448 : index
    %c0_88 = arith.constant 0 : index
    %268 = vector.load %arg6[%c448, %c0_88] : memref<512x2xf32, #tpu.memory_space<vmem>>, vector<64x2xf32>
    tpu.vector_store %arg6[%c448, %c0_88], %267 {strides = array<i32>} : memref<512x2xf32, #tpu.memory_space<vmem>>, vector<64x2xf32>,
    return
  }
  func.func @transform_0(%arg0: i32) -> (i32, i32) {
    %c0_i32 = arith.constant 0 : i32
    %c0_i32_0 = arith.constant 0 : i32
    return %arg0, %c0_i32 : i32, i32
  }
  func.func @transform_1(%arg0: i32) -> (i32, i32) {
    %c0_i32 = arith.constant 0 : i32
    %c0_i32_0 = arith.constant 0 : i32
    %c0_i32_1 = arith.constant 0 : i32
    return %c0_i32, %c0_i32_0 : i32, i32
  }
  func.func @transform_2(%arg0: i32) -> (i32, i32) {
    %c0_i32 = arith.constant 0 : i32
    %c0_i32_0 = arith.constant 0 : i32
    %c0_i32_1 = arith.constant 0 : i32
    return %c0_i32, %c0_i32_0 : i32, i32
  }
  func.func @transform_3(%arg0: i32) -> (i32, i32) {
    %c0_i32 = arith.constant 0 : i32
    %c0_i32_0 = arith.constant 0 : i32
    %c0_i32_1 = arith.constant 0 : i32
    return %c0_i32, %c0_i32_0 : i32, i32
  }
  func.func @transform_4(%arg0: i32) -> (i32, i32) {
    %c0_i32 = arith.constant 0 : i32
    %c0_i32_0 = arith.constant 0 : i32
    %c0_i32_1 = arith.constant 0 : i32
    return %c0_i32, %c0_i32_0 : i32, i32
  }
  func.func @transform_5(%arg0: i32) -> (i32, i32) {
    %c0_i32 = arith.constant 0 : i32
    %c0_i32_0 = arith.constant 0 : i32
    return %arg0, %c0_i32 : i32, i32
  }
}

</mosaic_0001>

<llo_original>
// kernel: core.1
$region0: #{core.1}
  #allocation0 [shape = 'u32[]', space=smem, size = 0x4, offset = 0x4, fixed_abs, tag = 'smem constant byte address 0x4 - core index']
  #allocation1 [shape = 'u32[72,128]{1,0:T(1,128)}', space=vmem, size = 0x9000, scoped, tag = 'internal scratch']
  %s0 = inlined_call_operand.vmem [shape: f32[1024,10], index: 0, kind: input, shape index: {}]
  %s1 = inlined_call_operand.vmem [shape: f32[10,20], index: 1, kind: input, shape index: {}]
  %s2 = inlined_call_operand.vmem [shape: f32[1,20], index: 2, kind: input, shape index: {}]
  %s3 = inlined_call_operand.vmem [shape: f32[20,2], index: 3, kind: input, shape index: {}]
  %s4 = inlined_call_operand.vmem [shape: f32[1,2], index: 4, kind: input, shape index: {}]
  %s5 = inlined_call_operand.vmem [shape: f32[1024,2], index: 5, kind: output, shape index: {}]
  %s6 = sld [smem:[#allocation0]]
  $region53: #{core.1} parent=0
    _
  %s8 = ssub.s32 1, %s6
  %s9 = scalar_select 0, %s8, %s6
  loop: start=0, step=1, limit=4
  $region2: #{core.1} parent=0 // loop_pre_header
    _
  $region3: #{core.1} parent=0 // loop_header
    %s11 = sphi 0, %s15
    %p12 = scmp.ge.s32.totalorder %s11, 4
    %s21 = sphi 0, %s23
    %s24 = sphi 0, %s21
    %s25 = sphi 0, %s24
    %s41 = sphi 0, %s25
    %s45 = sphi 0, %s45
    %s47 = sphi 0, %s45
    %s48 = sphi 0, %s47
    %s62 = sphi 0, %s48
    %s66 = sphi 0, %s66
    %s68 = sphi 0, %s66
    %s69 = sphi 0, %s68
    %s83 = sphi 0, %s69
    %s87 = sphi 0, %s87
    %s89 = sphi 0, %s87
    %s90 = sphi 0, %s89
    %s104 = sphi 0, %s90
    %s108 = sphi 0, %s108
    %s110 = sphi 0, %s108
    %s111 = sphi 0, %s110
    %s125 = sphi 0, %s111
    %s131 = sphi 0, %s133
    %s134 = sphi 0, %s131
    %s135 = sphi 0, %s134
    %s151 = sphi 0, %s135
  $region4: #{core.1} parent=0 // loop_header_branch
    %14 = sbr.rel (%p12) target = $region8
  $region5: #{core.1} parent=0 // loop_body
    %s16 = ssub.s32 %s11, 1
    %s17 = ssub.s32 %s11, 2
    %s18 = sadd.s32 %s11, 1
    %s19 = ssub.s32 %s11, %s18
    %p20 = scmp.eq.s32.totalorder %s19, 0
    %s22 = sadd.s32 %s21, 1
    %s23 = scalar_select %p20, %s21, %s22
    %p26 = pneg %p20
    %p27 = scmp.eq.s32.totalorder %s11, 1
    %p28 = por %p26, %p27
    %p29 = scmp.ne.s32.totalorder %s21, %s24
    %p30 = scmp.eq.s32.totalorder %s11, 0
    %p31 = por %p29, %p30
    %p32 = scmp.ne.s32.totalorder %s21, %s24
    %p33 = scmp.eq.s32.totalorder %s16, 1
    %p34 = por %p32, %p33
    %p35 = scmp.ne.s32.totalorder %s24, %s25
    %p36 = scmp.eq.s32.totalorder %s16, 0
    %p37 = por %p35, %p36
    %p38 = scmp.ne.s32.totalorder %s24, %s25
    %p39 = scmp.eq.s32.totalorder %s17, 1
    %p40 = por %p38, %p39
    %p42 = scmp.ne.s32.totalorder %s25, %s41
    %p43 = scmp.eq.s32.totalorder %s17, 0
    %p44 = por %p42, %p43
    %s46 = sadd.s32 %s45, 1
    %p49 = scmp.eq.s32.totalorder %s11, 1
    %p50 = scmp.ne.s32.totalorder %s45, %s47
    %p51 = scmp.eq.s32.totalorder %s11, 0
    %p52 = por %p50, %p51
    %p53 = scmp.ne.s32.totalorder %s45, %s47
    %p54 = scmp.eq.s32.totalorder %s16, 1
    %p55 = por %p53, %p54
    %p56 = scmp.ne.s32.totalorder %s47, %s48
    %p57 = scmp.eq.s32.totalorder %s16, 0
    %p58 = por %p56, %p57
    %p59 = scmp.ne.s32.totalorder %s47, %s48
    %p60 = scmp.eq.s32.totalorder %s17, 1
    %p61 = por %p59, %p60
    %p63 = scmp.ne.s32.totalorder %s48, %s62
    %p64 = scmp.eq.s32.totalorder %s17, 0
    %p65 = por %p63, %p64
    %s67 = sadd.s32 %s66, 1
    %p70 = scmp.eq.s32.totalorder %s11, 1
    %p71 = scmp.ne.s32.totalorder %s66, %s68
    %p72 = scmp.eq.s32.totalorder %s11, 0
    %p73 = por %p71, %p72
    %p74 = scmp.ne.s32.totalorder %s66, %s68
    %p75 = scmp.eq.s32.totalorder %s16, 1
    %p76 = por %p74, %p75
    %p77 = scmp.ne.s32.totalorder %s68, %s69
    %p78 = scmp.eq.s32.totalorder %s16, 0
    %p79 = por %p77, %p78
    %p80 = scmp.ne.s32.totalorder %s68, %s69
    %p81 = scmp.eq.s32.totalorder %s17, 1
    %p82 = por %p80, %p81
    %p84 = scmp.ne.s32.totalorder %s69, %s83
    %p85 = scmp.eq.s32.totalorder %s17, 0
    %p86 = por %p84, %p85
    %s88 = sadd.s32 %s87, 1
    %p91 = scmp.eq.s32.totalorder %s11, 1
    %p92 = scmp.ne.s32.totalorder %s87, %s89
    %p93 = scmp.eq.s32.totalorder %s11, 0
    %p94 = por %p92, %p93
    %p95 = scmp.ne.s32.totalorder %s87, %s89
    %p96 = scmp.eq.s32.totalorder %s16, 1
    %p97 = por %p95, %p96
    %p98 = scmp.ne.s32.totalorder %s89, %s90
    %p99 = scmp.eq.s32.totalorder %s16, 0
    %p100 = por %p98, %p99
    %p101 = scmp.ne.s32.totalorder %s89, %s90
    %p102 = scmp.eq.s32.totalorder %s17, 1
    %p103 = por %p101, %p102
    %p105 = scmp.ne.s32.totalorder %s90, %s104
    %p106 = scmp.eq.s32.totalorder %s17, 0
    %p107 = por %p105, %p106
    %s109 = sadd.s32 %s108, 1
    %p112 = scmp.eq.s32.totalorder %s11, 1
    %p113 = scmp.ne.s32.totalorder %s108, %s110
    %p114 = scmp.eq.s32.totalorder %s11, 0
    %p115 = por %p113, %p114
    %p116 = scmp.ne.s32.totalorder %s108, %s110
    %p117 = scmp.eq.s32.totalorder %s16, 1
    %p118 = por %p116, %p117
    %p119 = scmp.ne.s32.totalorder %s110, %s111
    %p120 = scmp.eq.s32.totalorder %s16, 0
    %p121 = por %p119, %p120
    %p122 = scmp.ne.s32.totalorder %s110, %s111
    %p123 = scmp.eq.s32.totalorder %s17, 1
    %p124 = por %p122, %p123
    %p126 = scmp.ne.s32.totalorder %s111, %s125
    %p127 = scmp.eq.s32.totalorder %s17, 0
    %p128 = por %p126, %p127
    %s129 = ssub.s32 %s11, %s18
    %p130 = scmp.eq.s32.totalorder %s129, 0
    %s132 = sadd.s32 %s131, 1
    %s133 = scalar_select %p130, %s131, %s132
    %p136 = pneg %p130
    %p137 = scmp.eq.s32.totalorder %s11, 1
    %p138 = por %p136, %p137
    %p139 = scmp.ne.s32.totalorder %s131, %s134
    %p140 = scmp.eq.s32.totalorder %s11, 0
    %p141 = por %p139, %p140
    %p142 = scmp.ne.s32.totalorder %s131, %s134
    %p143 = scmp.eq.s32.totalorder %s16, 1
    %p144 = por %p142, %p143
    %p145 = scmp.ne.s32.totalorder %s134, %s135
    %p146 = scmp.eq.s32.totalorder %s16, 0
    %p147 = por %p145, %p146
    %p148 = scmp.ne.s32.totalorder %s134, %s135
    %p149 = scmp.eq.s32.totalorder %s17, 1
    %p150 = por %p148, %p149
    %p152 = scmp.ne.s32.totalorder %s135, %s151
    %p153 = scmp.eq.s32.totalorder %s17, 0
    %p154 = por %p152, %p153
    %p155 = scmp.le.s32.totalorder 1, %s11
    %p156 = scmp.lt.s32.totalorder %s11, 3
    %p157 = pnand %p155, %p156
    %p158 = pneg %p157
    // Predicated region
    $region9: #{core.1} parent=5 // pred_check
      _
    $region10: #{core.1} parent=5 // pred_check_branch
      %160 = sbr.rel (%p157) target = $region12
    $region11: #{core.1} parent=5 // pred_region
      %s161 = ssub.s32 %s11, 1
      // Predicated region
      $region13: #{core.1} parent=11 // pred_check
        %p162 = pneg %p58
      $region14: #{core.1} parent=11 // pred_check_branch
        %164 = sbr.rel (%p162) target = $region16
      $region15: #{core.1} parent=11 // pred_region
        _
      $region16: #{core.1} parent=11 // pred_fallthru
        _
      // Predicated region
      $region17: #{core.1} parent=11 // pred_check
        %p165 = pneg %p79
      $region18: #{core.1} parent=11 // pred_check_branch
        %167 = sbr.rel (%p165) target = $region20
      $region19: #{core.1} parent=11 // pred_region
        _
      $region20: #{core.1} parent=11 // pred_fallthru
        _
      // Predicated region
      $region21: #{core.1} parent=11 // pred_check
        %p168 = pneg %p100
      $region22: #{core.1} parent=11 // pred_check_branch
        %170 = sbr.rel (%p168) target = $region24
      $region23: #{core.1} parent=11 // pred_region
        _
      $region24: #{core.1} parent=11 // pred_fallthru
        _
      // Predicated region
      $region25: #{core.1} parent=11 // pred_check
        %p171 = pneg %p121
      $region26: #{core.1} parent=11 // pred_check_branch
        %173 = sbr.rel (%p171) target = $region28
      $region27: #{core.1} parent=11 // pred_region
        _
      $region28: #{core.1} parent=11 // pred_fallthru
        _
    $region12: #{core.1} parent=5 // pred_fallthru
      _
    %p174 = scmp.lt.s32.totalorder %s11, 2
    // Predicated region
    $region29: #{core.1} parent=5 // pred_check
      %p175 = pneg %p174
    $region30: #{core.1} parent=5 // pred_check_branch
      %177 = sbr.rel (%p175) target = $region32
    $region31: #{core.1} parent=5 // pred_region
      // Predicated region
      $region33: #{core.1} parent=31 // pred_check
        %p178 = pneg %p31
      $region34: #{core.1} parent=31 // pred_check_branch
        %180 = sbr.rel (%p178) target = $region36
      $region35: #{core.1} parent=31 // pred_region
        %s181 = smul.u32 64, %s11
        %p182 = scmp.lt.s32.totalorder %s181, 127
        %s183 = scalar_select %p182, %s181, 127
        %s184 = smul.addr %s183, 8
        %s185 = scalar_lea.vmem %s0, %s184
        %s186 = smul.u32 64, %s11
      $region36: #{core.1} parent=31 // pred_fallthru
        _
    $region32: #{core.1} parent=5 // pred_fallthru
      _
    %p187 = scmp.le.s32.totalorder 1, %s11
    %p188 = scmp.lt.s32.totalorder %s11, 3
    %p189 = pnand %p187, %p188
    %p190 = pneg %p189
    // Predicated region
    $region37: #{core.1} parent=5 // pred_check
      _
    $region38: #{core.1} parent=5 // pred_check_branch
      %192 = sbr.rel (%p189) target = $region40
    $region39: #{core.1} parent=5 // pred_region
      %s193 = ssub.s32 %s11, 1
      %s194 = smul.u32 64, %s16
      %p195 = scmp.lt.s32.totalorder %s194, 127
      %s196 = scalar_select %p195, %s194, 127
      %s197 = smul.addr %s196, 8
      %s198 = scalar_lea.vmem %s0, %s197
      %p199 = pneg %p37
      %p200 = pneg %p34
      %p201 = pneg %p58
      %p202 = pneg %p55
      %p203 = pneg %p79
      %p204 = pneg %p76
      %p205 = pneg %p100
      %p206 = pneg %p97
      %p207 = pneg %p121
      %p208 = pneg %p118
      %p209 = pneg %p147
      %p210 = pneg %p144
      %s211 = smul.u32 64, %s16
      %p212 = scmp.lt.s32.totalorder %s211, 127
      %s213 = scalar_select %p212, %s211, 127
      %s214 = smul.addr %s213, 8
      %s215 = scalar_lea.vmem %s5, %s214
      %s216 = smul.u32 64, %s16
      %p217 = scmp.lt.s32.totalorder %s216, 127
      %s218 = scalar_select %p217, %s216, 127
      %s219 = smul.addr %s218, 8
      %s220 = scalar_lea.vmem %s0, %s219
      %s221 = smul.u32 64, %s16
      %s222 = smul.u32 64, %s16
      %p223 = scmp.lt.s32.totalorder %s222, 127
      %s224 = scalar_select %p223, %s222, 127
      %s225 = smul.addr %s224, 8
      %s226 = scalar_lea.vmem %s5, %s225
      %s227 = smul.u32 64, %s16
      %v228 = vld [vmem:[%s1] sm:$0xff]
      %v229 = vld [vmem:[%s1 + $0x8] sm:$0x3]
      %v230 = vld [vmem:[%s2] sm:$0x1]
      %v231 = vld [vmem:[%s3] sm:$0xff]
      %v232 = vld [vmem:[%s3 + $0x8] sm:$0xff]
      %v233 = vld [vmem:[%s3 + $0x10] sm:$0xf]
      %v234 = vld [vmem:[%s4] sm:$0x1]
      %v235 = vld [vmem:[%s220] sm:$0xff]
      %v236 = vld [vmem:[%s220 + $0x8] sm:$0xff]
      %v237 = vld [vmem:[%s220 + $0x10] sm:$0xff]
      %v238 = vld [vmem:[%s220 + $0x18] sm:$0xff]
      %v239 = vld [vmem:[%s220 + $0x20] sm:$0xff]
      %v240 = vld [vmem:[%s220 + $0x28] sm:$0xff]
      %v241 = vld [vmem:[%s220 + $0x30] sm:$0xff]
      %v242 = vld [vmem:[%s220 + $0x38] sm:$0xff]
      %v243 = vld [vmem:[%s220 + $0x40] sm:$0xff]
      %v244 = vld [vmem:[%s220 + $0x48] sm:$0xff]
      %v245 = vld [vmem:[%s220 + $0x50] sm:$0xff]
      %v246 = vld [vmem:[%s220 + $0x58] sm:$0xff]
      %v247 = vld [vmem:[%s220 + $0x60] sm:$0xff]
      %v248 = vld [vmem:[%s220 + $0x68] sm:$0xff]
      %v249 = vld [vmem:[%s220 + $0x70] sm:$0xff]
      %v250 = vld [vmem:[%s220 + $0x78] sm:$0xff]
      %v251 = vld [vmem:[%s220 + $0x80] sm:$0xff]
      %v252 = vld [vmem:[%s220 + $0x88] sm:$0xff]
      %v253 = vld [vmem:[%s220 + $0x90] sm:$0xff]
      %v254 = vld [vmem:[%s220 + $0x98] sm:$0xff]
      %v255 = vld [vmem:[%s220 + $0xa0] sm:$0xff]
      %v256 = vld [vmem:[%s220 + $0xa8] sm:$0xff]
      %v257 = vld [vmem:[%s220 + $0xb0] sm:$0xff]
      %v258 = vld [vmem:[%s220 + $0xb8] sm:$0xff]
      %v259 = vld [vmem:[%s220 + $0xc0] sm:$0xff]
      %v260 = vld [vmem:[%s220 + $0xc8] sm:$0xff]
      %v261 = vld [vmem:[%s220 + $0xd0] sm:$0xff]
      %v262 = vld [vmem:[%s220 + $0xd8] sm:$0xff]
      %v263 = vld [vmem:[%s220 + $0xe0] sm:$0xff]
      %v264 = vld [vmem:[%s220 + $0xe8] sm:$0xff]
      %v265 = vld [vmem:[%s220 + $0xf0] sm:$0xff]
      %v266 = vld [vmem:[%s220 + $0xf8] sm:$0xff]
      %v267 = vld [vmem:[%s220 + $0x100] sm:$0xff]
      %v268 = vld [vmem:[%s220 + $0x108] sm:$0xff]
      %v269 = vld [vmem:[%s220 + $0x110] sm:$0xff]
      %v270 = vld [vmem:[%s220 + $0x118] sm:$0xff]
      %v271 = vld [vmem:[%s220 + $0x120] sm:$0xff]
      %v272 = vld [vmem:[%s220 + $0x128] sm:$0xff]
      %v273 = vld [vmem:[%s220 + $0x130] sm:$0xff]
      %v274 = vld [vmem:[%s220 + $0x138] sm:$0xff]
      %v275 = vld [vmem:[%s220 + $0x140] sm:$0xff]
      %v276 = vld [vmem:[%s220 + $0x148] sm:$0xff]
      %v277 = vld [vmem:[%s220 + $0x150] sm:$0xff]
      %v278 = vld [vmem:[%s220 + $0x158] sm:$0xff]
      %v279 = vld [vmem:[%s220 + $0x160] sm:$0xff]
      %v280 = vld [vmem:[%s220 + $0x168] sm:$0xff]
      %v281 = vld [vmem:[%s220 + $0x170] sm:$0xff]
      %v282 = vld [vmem:[%s220 + $0x178] sm:$0xff]
      %v283 = vld [vmem:[%s220 + $0x180] sm:$0xff]
      %v284 = vld [vmem:[%s220 + $0x188] sm:$0xff]
      %v285 = vld [vmem:[%s220 + $0x190] sm:$0xff]
      %v286 = vld [vmem:[%s220 + $0x198] sm:$0xff]
      %v287 = vld [vmem:[%s220 + $0x1a0] sm:$0xff]
      %v288 = vld [vmem:[%s220 + $0x1a8] sm:$0xff]
      %v289 = vld [vmem:[%s220 + $0x1b0] sm:$0xff]
      %v290 = vld [vmem:[%s220 + $0x1b8] sm:$0xff]
      %v291 = vld [vmem:[%s220 + $0x1c0] sm:$0xff]
      %v292 = vld [vmem:[%s220 + $0x1c8] sm:$0xff]
      %v293 = vld [vmem:[%s220 + $0x1d0] sm:$0xff]
      %v294 = vld [vmem:[%s220 + $0x1d8] sm:$0xff]
      %v295 = vld [vmem:[%s220 + $0x1e0] sm:$0xff]
      %v296 = vld [vmem:[%s220 + $0x1e8] sm:$0xff]
      %v297 = vld [vmem:[%s220 + $0x1f0] sm:$0xff]
      %v298 = vld [vmem:[%s220 + $0x1f8] sm:$0xff]
      %v299 = vperm.slane %v235, 0
      %v300 = vsub.f32 %v235, %v299
      %v301 = vsub.f32 %v236, %v299
      %v302 = vsub.f32 %v237, %v299
      %v303 = vsub.f32 %v238, %v299
      %v304 = vsub.f32 %v239, %v299
      %v305 = vsub.f32 %v240, %v299
      %v306 = vsub.f32 %v241, %v299
      %v307 = vsub.f32 %v242, %v299
      %vm308 = vcmask 80896
      %v309 = vsel %vm308, %v300, 0.0
      %v310 = vsel %vm308, %v301, 0.0
      %v311 = vadd.f32 %v309, %v310
      %v312 = vsel %vm308, %v302, 0.0
      %v313 = vadd.f32 %v311, %v312
      %v314 = vsel %vm308, %v303, 0.0
      %v315 = vadd.f32 %v313, %v314
      %v316 = vsel %vm308, %v304, 0.0
      %v317 = vadd.f32 %v315, %v316
      %v318 = vsel %vm308, %v305, 0.0
      %v319 = vadd.f32 %v317, %v318
      %v320 = vsel %vm308, %v306, 0.0
      %v321 = vadd.f32 %v319, %v320
      %v322 = vsel %vm308, %v307, 0.0
      %v323 = vadd.f32 %v321, %v322
      %v324 = vrot.slane %v323, 4
      %v325 = vadd.f32 %v323, %v324
      %v326 = vrot.slane %v325, 2
      %v327 = vadd.f32 %v325, %v326
      %v328 = vrot.slane %v327, 1
      %v329 = vadd.f32 %v327, %v328
      %v330 = vmul.f32 %v300, %v300
      %v331 = vmul.f32 %v301, %v301
      %v332 = vmul.f32 %v302, %v302
      %v333 = vmul.f32 %v303, %v303
      %v334 = vmul.f32 %v304, %v304
      %v335 = vmul.f32 %v305, %v305
      %v336 = vmul.f32 %v306, %v306
      %v337 = vmul.f32 %v307, %v307
      %v338 = vsel %vm308, %v330, 0.0
      %v339 = vsel %vm308, %v331, 0.0
      %v340 = vadd.f32 %v338, %v339
      %v341 = vsel %vm308, %v332, 0.0
      %v342 = vadd.f32 %v340, %v341
      %v343 = vsel %vm308, %v333, 0.0
      %v344 = vadd.f32 %v342, %v343
      %v345 = vsel %vm308, %v334, 0.0
      %v346 = vadd.f32 %v344, %v345
      %v347 = vsel %vm308, %v335, 0.0
      %v348 = vadd.f32 %v346, %v347
      %v349 = vsel %vm308, %v336, 0.0
      %v350 = vadd.f32 %v348, %v349
      %v351 = vsel %vm308, %v337, 0.0
      %v352 = vadd.f32 %v350, %v351
      %v353 = vrot.slane %v352, 4
      %v354 = vadd.f32 %v352, %v353
      %v355 = vrot.slane %v354, 2
      %v356 = vadd.f32 %v354, %v355
      %v357 = vrot.slane %v356, 1
      %v358 = vadd.f32 %v356, %v357
      %v359 = vmul.f32 %v329, 0.015625
      %v360 = vmul.f32 %v358, 0.015625
      %v361 = vmul.f32 %v359, %v359
      %v362 = vsub.f32 %v360, %v361
      %v363 = vmax.f32 %v362, 0.0
      %v364 = vadd.f32 %v363, 1e-05
      %v365 = vrsqrt.pop %v364
      %v366 = vmul.f32 %v365, %v364
      %v367 = vmul.f32 %v366, %v365
      %v368 = vmul.f32 0.5, %v367
      %v369 = vsub.f32 1.5, %v368
      %v370 = vmul.f32 %v365, %v369
      %vm371 = vweird.f32 %v364
      %vm372 = vweird.f32 %v365
      %vm373 = vmor %vm371, %vm372
      %v374 = vsel %vm373, %v365, %v370
      %v375 = vsub.f32 %v300, %v359
      %v376 = vsub.f32 %v301, %v359
      %v377 = vsub.f32 %v302, %v359
      %v378 = vsub.f32 %v303, %v359
      %v379 = vsub.f32 %v304, %v359
      %v380 = vsub.f32 %v305, %v359
      %v381 = vsub.f32 %v306, %v359
      %v382 = vsub.f32 %v307, %v359
      %v383 = vmul.f32 %v375, %v374
      %v384 = vmul.f32 %v376, %v374
      %v385 = vmul.f32 %v377, %v374
      %v386 = vmul.f32 %v378, %v374
      %v387 = vmul.f32 %v379, %v374
      %v388 = vmul.f32 %v380, %v374
      %v389 = vmul.f32 %v381, %v374
      %v390 = vmul.f32 %v382, %v374
      %v392 = vperm.slane %v230, 0
      %v395 = vsel %vm308, %v383, 0
      %v398 = vsel %vm308, %v384, 0
      %v401 = vsel %vm308, %v385, 0
      %v404 = vsel %vm308, %v386, 0
      %v407 = vsel %vm308, %v387, 0
      %v410 = vsel %vm308, %v388, 0
      %v413 = vsel %vm308, %v389, 0
      %v416 = vsel %vm308, %v390, 0
      %vm418 = vcmask 1041408
      %v420 = vsel %vm418, %v229, 0
      %422 = vmatpush.msra.mxu0 0.0
      %423 = vmatpush.msra.mxu0 0.0
      %424 = vmatpush.msra.mxu0 0.0
      %425 = vmatpush.msra.mxu0 0.0
      %426 = vmatpush.msra.mxu0 0.0
      %427 = vmatpush.msra.mxu0 0.0
      %428 = vmatpush.msra.mxu0 0.0
      %429 = vmatpush.msra.mxu0 0.0
      %430 = vmatpush.msra.mxu0 0.0
      %431 = vmatpush.msra.mxu0 0.0
      %432 = vmatpush.msra.mxu0 0.0
      %433 = vmatpush.msra.mxu0 0.0
      %434 = vmatpush.msra.mxu0 0.0
      %435 = vmatpush.msra.mxu0 0.0
      %436 = vmatpush.msra.mxu0 %v420
      %437 = vmatpush.msra.mxu0 %v228
      %438 = vmatmul.f32.gmra.mxu0 %v395
      %v439 = vpop.f32.mrf.mxu0
      %v440 = vadd.f32 %v392, %v439
      %441 = vmatmul.f32.gmra.mxu0 %v398
      %v442 = vpop.f32.mrf.mxu0
      %v443 = vadd.f32 %v392, %v442
      %444 = vmatmul.f32.gmra.mxu0 %v401
      %v445 = vpop.f32.mrf.mxu0
      %v446 = vadd.f32 %v392, %v445
      %447 = vmatmul.f32.gmra.mxu0 %v404
      %v448 = vpop.f32.mrf.mxu0
      %v449 = vadd.f32 %v392, %v448
      %450 = vmatmul.f32.gmra.mxu0 %v407
      %v451 = vpop.f32.mrf.mxu0
      %v452 = vadd.f32 %v392, %v451
      %453 = vmatmul.f32.gmra.mxu0 %v410
      %v454 = vpop.f32.mrf.mxu0
      %v455 = vadd.f32 %v392, %v454
      %456 = vmatmul.f32.gmra.mxu0 %v413
      %v457 = vpop.f32.mrf.mxu0
      %v458 = vadd.f32 %v392, %v457
      %459 = vmatmul.f32.gmra.mxu0 %v416
      %v460 = vpop.f32.mrf.mxu0
      %v461 = vadd.f32 %v392, %v460
      %462 = vdwg.mxu0
      %v463 = vmax.f32 %v440, 0.0
      %v464 = vmax.f32 %v443, 0.0
      %v465 = vmax.f32 %v446, 0.0
      %v466 = vmax.f32 %v449, 0.0
      %v467 = vmax.f32 %v452, 0.0
      %v468 = vmax.f32 %v455, 0.0
      %v469 = vmax.f32 %v458, 0.0
      %v470 = vmax.f32 %v461, 0.0
      %v472 = vperm.slane %v234, 0
      %vm474 = vcmask 162816
      %v476 = vsel %vm474, %v463, 0
      %v479 = vsel %vm474, %v464, 0
      %v482 = vsel %vm474, %v465, 0
      %v485 = vsel %vm474, %v466, 0
      %v488 = vsel %vm474, %v467, 0
      %v491 = vsel %vm474, %v468, 0
      %v494 = vsel %vm474, %v469, 0
      %v497 = vsel %vm474, %v470, 0
      %vm499 = vcmask 1043456
      %v501 = vsel %vm499, %v233, 0
      %503 = vmatpush.msra.mxu0 0.0
      %504 = vmatpush.msra.mxu0 0.0
      %505 = vmatpush.msra.mxu0 0.0
      %506 = vmatpush.msra.mxu0 0.0
      %507 = vmatpush.msra.mxu0 0.0
      %508 = vmatpush.msra.mxu0 0.0
      %509 = vmatpush.msra.mxu0 0.0
      %510 = vmatpush.msra.mxu0 0.0
      %511 = vmatpush.msra.mxu0 0.0
      %512 = vmatpush.msra.mxu0 0.0
      %513 = vmatpush.msra.mxu0 0.0
      %514 = vmatpush.msra.mxu0 0.0
      %515 = vmatpush.msra.mxu0 0.0
      %516 = vmatpush.msra.mxu0 %v501
      %517 = vmatpush.msra.mxu0 %v232
      %518 = vmatpush.msra.mxu0 %v231
      %519 = vmatmul.f32.gmra.mxu0 %v476
      %v520 = vpop.f32.mrf.mxu0
      %v521 = vadd.f32 %v472, %v520
      %522 = vmatmul.f32.gmra.mxu0 %v479
      %v523 = vpop.f32.mrf.mxu0
      %v524 = vadd.f32 %v472, %v523
      %525 = vmatmul.f32.gmra.mxu0 %v482
      %v526 = vpop.f32.mrf.mxu0
      %v527 = vadd.f32 %v472, %v526
      %528 = vmatmul.f32.gmra.mxu0 %v485
      %v529 = vpop.f32.mrf.mxu0
      %v530 = vadd.f32 %v472, %v529
      %531 = vmatmul.f32.gmra.mxu0 %v488
      %v532 = vpop.f32.mrf.mxu0
      %v533 = vadd.f32 %v472, %v532
      %534 = vmatmul.f32.gmra.mxu0 %v491
      %v535 = vpop.f32.mrf.mxu0
      %v536 = vadd.f32 %v472, %v535
      %537 = vmatmul.f32.gmra.mxu0 %v494
      %v538 = vpop.f32.mrf.mxu0
      %v539 = vadd.f32 %v472, %v538
      %540 = vmatmul.f32.gmra.mxu0 %v497
      %v541 = vpop.f32.mrf.mxu0
      %v542 = vadd.f32 %v472, %v541
      %543 = vdwg.mxu0
      %vm544 = vcmask 15360
      %545 = vst.msk [vmem:[%s226] sm:$0xff] %vm544, %v521
      %546 = vst.msk [vmem:[%s226 + $0x8] sm:$0xff] %vm544, %v524
      %547 = vst.msk [vmem:[%s226 + $0x10] sm:$0xff] %vm544, %v527
      %548 = vst.msk [vmem:[%s226 + $0x18] sm:$0xff] %vm544, %v530
      %549 = vst.msk [vmem:[%s226 + $0x20] sm:$0xff] %vm544, %v533
      %550 = vst.msk [vmem:[%s226 + $0x28] sm:$0xff] %vm544, %v536
      %551 = vst.msk [vmem:[%s226 + $0x30] sm:$0xff] %vm544, %v539
      %552 = vst.msk [vmem:[%s226 + $0x38] sm:$0xff] %vm544, %v542
      %v553 = vperm.slane %v243, 0
      %v554 = vsub.f32 %v243, %v553
      %v555 = vsub.f32 %v244, %v553
      %v556 = vsub.f32 %v245, %v553
      %v557 = vsub.f32 %v246, %v553
      %v558 = vsub.f32 %v247, %v553
      %v559 = vsub.f32 %v248, %v553
      %v560 = vsub.f32 %v249, %v553
      %v561 = vsub.f32 %v250, %v553
      %v562 = vsel %vm308, %v554, 0.0
      %v563 = vsel %vm308, %v555, 0.0
      %v564 = vadd.f32 %v562, %v563
      %v565 = vsel %vm308, %v556, 0.0
      %v566 = vadd.f32 %v564, %v565
      %v567 = vsel %vm308, %v557, 0.0
      %v568 = vadd.f32 %v566, %v567
      %v569 = vsel %vm308, %v558, 0.0
      %v570 = vadd.f32 %v568, %v569
      %v571 = vsel %vm308, %v559, 0.0
      %v572 = vadd.f32 %v570, %v571
      %v573 = vsel %vm308, %v560, 0.0
      %v574 = vadd.f32 %v572, %v573
      %v575 = vsel %vm308, %v561, 0.0
      %v576 = vadd.f32 %v574, %v575
      %v577 = vrot.slane %v576, 4
      %v578 = vadd.f32 %v576, %v577
      %v579 = vrot.slane %v578, 2
      %v580 = vadd.f32 %v578, %v579
      %v581 = vrot.slane %v580, 1
      %v582 = vadd.f32 %v580, %v581
      %v583 = vmul.f32 %v554, %v554
      %v584 = vmul.f32 %v555, %v555
      %v585 = vmul.f32 %v556, %v556
      %v586 = vmul.f32 %v557, %v557
      %v587 = vmul.f32 %v558, %v558
      %v588 = vmul.f32 %v559, %v559
      %v589 = vmul.f32 %v560, %v560
      %v590 = vmul.f32 %v561, %v561
      %v591 = vsel %vm308, %v583, 0.0
      %v592 = vsel %vm308, %v584, 0.0
      %v593 = vadd.f32 %v591, %v592
      %v594 = vsel %vm308, %v585, 0.0
      %v595 = vadd.f32 %v593, %v594
      %v596 = vsel %vm308, %v586, 0.0
      %v597 = vadd.f32 %v595, %v596
      %v598 = vsel %vm308, %v587, 0.0
      %v599 = vadd.f32 %v597, %v598
      %v600 = vsel %vm308, %v588, 0.0
      %v601 = vadd.f32 %v599, %v600
      %v602 = vsel %vm308, %v589, 0.0
      %v603 = vadd.f32 %v601, %v602
      %v604 = vsel %vm308, %v590, 0.0
      %v605 = vadd.f32 %v603, %v604
      %v606 = vrot.slane %v605, 4
      %v607 = vadd.f32 %v605, %v606
      %v608 = vrot.slane %v607, 2
      %v609 = vadd.f32 %v607, %v608
      %v610 = vrot.slane %v609, 1
      %v611 = vadd.f32 %v609, %v610
      %v612 = vmul.f32 %v582, 0.015625
      %v613 = vmul.f32 %v611, 0.015625
      %v614 = vmul.f32 %v612, %v612
      %v615 = vsub.f32 %v613, %v614
      %v616 = vmax.f32 %v615, 0.0
      %v617 = vadd.f32 %v616, 1e-05
      %v618 = vrsqrt.pop %v617
      %v619 = vmul.f32 %v618, %v617
      %v620 = vmul.f32 %v619, %v618
      %v621 = vmul.f32 0.5, %v620
      %v622 = vsub.f32 1.5, %v621
      %v623 = vmul.f32 %v618, %v622
      %vm624 = vweird.f32 %v617
      %vm625 = vweird.f32 %v618
      %vm626 = vmor %vm624, %vm625
      %v627 = vsel %vm626, %v618, %v623
      %v628 = vsub.f32 %v554, %v612
      %v629 = vsub.f32 %v555, %v612
      %v630 = vsub.f32 %v556, %v612
      %v631 = vsub.f32 %v557, %v612
      %v632 = vsub.f32 %v558, %v612
      %v633 = vsub.f32 %v559, %v612
      %v634 = vsub.f32 %v560, %v612
      %v635 = vsub.f32 %v561, %v612
      %v636 = vmul.f32 %v628, %v627
      %v637 = vmul.f32 %v629, %v627
      %v638 = vmul.f32 %v630, %v627
      %v639 = vmul.f32 %v631, %v627
      %v640 = vmul.f32 %v632, %v627
      %v641 = vmul.f32 %v633, %v627
      %v642 = vmul.f32 %v634, %v627
      %v643 = vmul.f32 %v635, %v627
      %v645 = vsel %vm308, %v636, 0
      %v648 = vsel %vm308, %v637, 0
      %v651 = vsel %vm308, %v638, 0
      %v654 = vsel %vm308, %v639, 0
      %v657 = vsel %vm308, %v640, 0
      %v660 = vsel %vm308, %v641, 0
      %v663 = vsel %vm308, %v642, 0
      %v666 = vsel %vm308, %v643, 0
      %668 = vmatpush.msra.mxu0 0.0
      %669 = vmatpush.msra.mxu0 0.0
      %670 = vmatpush.msra.mxu0 0.0
      %671 = vmatpush.msra.mxu0 0.0
      %672 = vmatpush.msra.mxu0 0.0
      %673 = vmatpush.msra.mxu0 0.0
      %674 = vmatpush.msra.mxu0 0.0
      %675 = vmatpush.msra.mxu0 0.0
      %676 = vmatpush.msra.mxu0 0.0
      %677 = vmatpush.msra.mxu0 0.0
      %678 = vmatpush.msra.mxu0 0.0
      %679 = vmatpush.msra.mxu0 0.0
      %680 = vmatpush.msra.mxu0 0.0
      %681 = vmatpush.msra.mxu0 0.0
      %682 = vmatpush.msra.mxu0 %v420
      %683 = vmatpush.msra.mxu0 %v228
      %684 = vmatmul.f32.gmra.mxu0 %v645
      %v685 = vpop.f32.mrf.mxu0
      %v686 = vadd.f32 %v392, %v685
      %687 = vmatmul.f32.gmra.mxu0 %v648
      %v688 = vpop.f32.mrf.mxu0
      %v689 = vadd.f32 %v392, %v688
      %690 = vmatmul.f32.gmra.mxu0 %v651
      %v691 = vpop.f32.mrf.mxu0
      %v692 = vadd.f32 %v392, %v691
      %693 = vmatmul.f32.gmra.mxu0 %v654
      %v694 = vpop.f32.mrf.mxu0
      %v695 = vadd.f32 %v392, %v694
      %696 = vmatmul.f32.gmra.mxu0 %v657
      %v697 = vpop.f32.mrf.mxu0
      %v698 = vadd.f32 %v392, %v697
      %699 = vmatmul.f32.gmra.mxu0 %v660
      %v700 = vpop.f32.mrf.mxu0
      %v701 = vadd.f32 %v392, %v700
      %702 = vmatmul.f32.gmra.mxu0 %v663
      %v703 = vpop.f32.mrf.mxu0
      %v704 = vadd.f32 %v392, %v703
      %705 = vmatmul.f32.gmra.mxu0 %v666
      %v706 = vpop.f32.mrf.mxu0
      %v707 = vadd.f32 %v392, %v706
      %708 = vdwg.mxu0
      %v709 = vmax.f32 %v686, 0.0
      %v710 = vmax.f32 %v689, 0.0
      %v711 = vmax.f32 %v692, 0.0
      %v712 = vmax.f32 %v695, 0.0
      %v713 = vmax.f32 %v698, 0.0
      %v714 = vmax.f32 %v701, 0.0
      %v715 = vmax.f32 %v704, 0.0
      %v716 = vmax.f32 %v707, 0.0
      %v718 = vsel %vm474, %v709, 0
      %v721 = vsel %vm474, %v710, 0
      %v724 = vsel %vm474, %v711, 0
      %v727 = vsel %vm474, %v712, 0
      %v730 = vsel %vm474, %v713, 0
      %v733 = vsel %vm474, %v714, 0
      %v736 = vsel %vm474, %v715, 0
      %v739 = vsel %vm474, %v716, 0
      %741 = vmatpush.msra.mxu0 0.0
      %742 = vmatpush.msra.mxu0 0.0
      %743 = vmatpush.msra.mxu0 0.0
      %744 = vmatpush.msra.mxu0 0.0
      %745 = vmatpush.msra.mxu0 0.0
      %746 = vmatpush.msra.mxu0 0.0
      %747 = vmatpush.msra.mxu0 0.0
      %748 = vmatpush.msra.mxu0 0.0
      %749 = vmatpush.msra.mxu0 0.0
      %750 = vmatpush.msra.mxu0 0.0
      %751 = vmatpush.msra.mxu0 0.0
      %752 = vmatpush.msra.mxu0 0.0
      %753 = vmatpush.msra.mxu0 0.0
      %754 = vmatpush.msra.mxu0 %v501
      %755 = vmatpush.msra.mxu0 %v232
      %756 = vmatpush.msra.mxu0 %v231
      %757 = vmatmul.f32.gmra.mxu0 %v718
      %v758 = vpop.f32.mrf.mxu0
      %v759 = vadd.f32 %v472, %v758
      %760 = vmatmul.f32.gmra.mxu0 %v721
      %v761 = vpop.f32.mrf.mxu0
      %v762 = vadd.f32 %v472, %v761
      %763 = vmatmul.f32.gmra.mxu0 %v724
      %v764 = vpop.f32.mrf.mxu0
      %v765 = vadd.f32 %v472, %v764
      %766 = vmatmul.f32.gmra.mxu0 %v727
      %v767 = vpop.f32.mrf.mxu0
      %v768 = vadd.f32 %v472, %v767
      %769 = vmatmul.f32.gmra.mxu0 %v730
      %v770 = vpop.f32.mrf.mxu0
      %v771 = vadd.f32 %v472, %v770
      %772 = vmatmul.f32.gmra.mxu0 %v733
      %v773 = vpop.f32.mrf.mxu0
      %v774 = vadd.f32 %v472, %v773
      %775 = vmatmul.f32.gmra.mxu0 %v736
      %v776 = vpop.f32.mrf.mxu0
      %v777 = vadd.f32 %v472, %v776
      %778 = vmatmul.f32.gmra.mxu0 %v739
      %v779 = vpop.f32.mrf.mxu0
      %v780 = vadd.f32 %v472, %v779
      %781 = vdwg.mxu0
      %782 = vst.msk [vmem:[%s226 + $0x40] sm:$0xff] %vm544, %v759
      %783 = vst.msk [vmem:[%s226 + $0x48] sm:$0xff] %vm544, %v762
      %784 = vst.msk [vmem:[%s226 + $0x50] sm:$0xff] %vm544, %v765
      %785 = vst.msk [vmem:[%s226 + $0x58] sm:$0xff] %vm544, %v768
      %786 = vst.msk [vmem:[%s226 + $0x60] sm:$0xff] %vm544, %v771
      %787 = vst.msk [vmem:[%s226 + $0x68] sm:$0xff] %vm544, %v774
      %788 = vst.msk [vmem:[%s226 + $0x70] sm:$0xff] %vm544, %v777
      %789 = vst.msk [vmem:[%s226 + $0x78] sm:$0xff] %vm544, %v780
      %v790 = vperm.slane %v251, 0
      %v791 = vsub.f32 %v251, %v790
      %v792 = vsub.f32 %v252, %v790
      %v793 = vsub.f32 %v253, %v790
      %v794 = vsub.f32 %v254, %v790
      %v795 = vsub.f32 %v255, %v790
      %v796 = vsub.f32 %v256, %v790
      %v797 = vsub.f32 %v257, %v790
      %v798 = vsub.f32 %v258, %v790
      %v799 = vsel %vm308, %v791, 0.0
      %v800 = vsel %vm308, %v792, 0.0
      %v801 = vadd.f32 %v799, %v800
      %v802 = vsel %vm308, %v793, 0.0
      %v803 = vadd.f32 %v801, %v802
      %v804 = vsel %vm308, %v794, 0.0
      %v805 = vadd.f32 %v803, %v804
      %v806 = vsel %vm308, %v795, 0.0
      %v807 = vadd.f32 %v805, %v806
      %v808 = vsel %vm308, %v796, 0.0
      %v809 = vadd.f32 %v807, %v808
      %v810 = vsel %vm308, %v797, 0.0
      %v811 = vadd.f32 %v809, %v810
      %v812 = vsel %vm308, %v798, 0.0
      %v813 = vadd.f32 %v811, %v812
      %v814 = vrot.slane %v813, 4
      %v815 = vadd.f32 %v813, %v814
      %v816 = vrot.slane %v815, 2
      %v817 = vadd.f32 %v815, %v816
      %v818 = vrot.slane %v817, 1
      %v819 = vadd.f32 %v817, %v818
      %v820 = vmul.f32 %v791, %v791
      %v821 = vmul.f32 %v792, %v792
      %v822 = vmul.f32 %v793, %v793
      %v823 = vmul.f32 %v794, %v794
      %v824 = vmul.f32 %v795, %v795
      %v825 = vmul.f32 %v796, %v796
      %v826 = vmul.f32 %v797, %v797
      %v827 = vmul.f32 %v798, %v798
      %v828 = vsel %vm308, %v820, 0.0
      %v829 = vsel %vm308, %v821, 0.0
      %v830 = vadd.f32 %v828, %v829
      %v831 = vsel %vm308, %v822, 0.0
      %v832 = vadd.f32 %v830, %v831
      %v833 = vsel %vm308, %v823, 0.0
      %v834 = vadd.f32 %v832, %v833
      %v835 = vsel %vm308, %v824, 0.0
      %v836 = vadd.f32 %v834, %v835
      %v837 = vsel %vm308, %v825, 0.0
      %v838 = vadd.f32 %v836, %v837
      %v839 = vsel %vm308, %v826, 0.0
      %v840 = vadd.f32 %v838, %v839
      %v841 = vsel %vm308, %v827, 0.0
      %v842 = vadd.f32 %v840, %v841
      %v843 = vrot.slane %v842, 4
      %v844 = vadd.f32 %v842, %v843
      %v845 = vrot.slane %v844, 2
      %v846 = vadd.f32 %v844, %v845
      %v847 = vrot.slane %v846, 1
      %v848 = vadd.f32 %v846, %v847
      %v849 = vmul.f32 %v819, 0.015625
      %v850 = vmul.f32 %v848, 0.015625
      %v851 = vmul.f32 %v849, %v849
      %v852 = vsub.f32 %v850, %v851
      %v853 = vmax.f32 %v852, 0.0
      %v854 = vadd.f32 %v853, 1e-05
      %v855 = vrsqrt.pop %v854
      %v856 = vmul.f32 %v855, %v854
      %v857 = vmul.f32 %v856, %v855
      %v858 = vmul.f32 0.5, %v857
      %v859 = vsub.f32 1.5, %v858
      %v860 = vmul.f32 %v855, %v859
      %vm861 = vweird.f32 %v854
      %vm862 = vweird.f32 %v855
      %vm863 = vmor %vm861, %vm862
      %v864 = vsel %vm863, %v855, %v860
      %v865 = vsub.f32 %v791, %v849
      %v866 = vsub.f32 %v792, %v849
      %v867 = vsub.f32 %v793, %v849
      %v868 = vsub.f32 %v794, %v849
      %v869 = vsub.f32 %v795, %v849
      %v870 = vsub.f32 %v796, %v849
      %v871 = vsub.f32 %v797, %v849
      %v872 = vsub.f32 %v798, %v849
      %v873 = vmul.f32 %v865, %v864
      %v874 = vmul.f32 %v866, %v864
      %v875 = vmul.f32 %v867, %v864
      %v876 = vmul.f32 %v868, %v864
      %v877 = vmul.f32 %v869, %v864
      %v878 = vmul.f32 %v870, %v864
      %v879 = vmul.f32 %v871, %v864
      %v880 = vmul.f32 %v872, %v864
      %v882 = vsel %vm308, %v873, 0
      %v885 = vsel %vm308, %v874, 0
      %v888 = vsel %vm308, %v875, 0
      %v891 = vsel %vm308, %v876, 0
      %v894 = vsel %vm308, %v877, 0
      %v897 = vsel %vm308, %v878, 0
      %v900 = vsel %vm308, %v879, 0
      %v903 = vsel %vm308, %v880, 0
      %905 = vmatpush.msra.mxu0 0.0
      %906 = vmatpush.msra.mxu0 0.0
      %907 = vmatpush.msra.mxu0 0.0
      %908 = vmatpush.msra.mxu0 0.0
      %909 = vmatpush.msra.mxu0 0.0
      %910 = vmatpush.msra.mxu0 0.0
      %911 = vmatpush.msra.mxu0 0.0
      %912 = vmatpush.msra.mxu0 0.0
      %913 = vmatpush.msra.mxu0 0.0
      %914 = vmatpush.msra.mxu0 0.0
      %915 = vmatpush.msra.mxu0 0.0
      %916 = vmatpush.msra.mxu0 0.0
      %917 = vmatpush.msra.mxu0 0.0
      %918 = vmatpush.msra.mxu0 0.0
      %919 = vmatpush.msra.mxu0 %v420
      %920 = vmatpush.msra.mxu0 %v228
      %921 = vmatmul.f32.gmra.mxu0 %v882
      %v922 = vpop.f32.mrf.mxu0
      %v923 = vadd.f32 %v392, %v922
      %924 = vmatmul.f32.gmra.mxu0 %v885
      %v925 = vpop.f32.mrf.mxu0
      %v926 = vadd.f32 %v392, %v925
      %927 = vmatmul.f32.gmra.mxu0 %v888
      %v928 = vpop.f32.mrf.mxu0
      %v929 = vadd.f32 %v392, %v928
      %930 = vmatmul.f32.gmra.mxu0 %v891
      %v931 = vpop.f32.mrf.mxu0
      %v932 = vadd.f32 %v392, %v931
      %933 = vmatmul.f32.gmra.mxu0 %v894
      %v934 = vpop.f32.mrf.mxu0
      %v935 = vadd.f32 %v392, %v934
      %936 = vmatmul.f32.gmra.mxu0 %v897
      %v937 = vpop.f32.mrf.mxu0
      %v938 = vadd.f32 %v392, %v937
      %939 = vmatmul.f32.gmra.mxu0 %v900
      %v940 = vpop.f32.mrf.mxu0
      %v941 = vadd.f32 %v392, %v940
      %942 = vmatmul.f32.gmra.mxu0 %v903
      %v943 = vpop.f32.mrf.mxu0
      %v944 = vadd.f32 %v392, %v943
      %945 = vdwg.mxu0
      %v946 = vmax.f32 %v923, 0.0
      %v947 = vmax.f32 %v926, 0.0
      %v948 = vmax.f32 %v929, 0.0
      %v949 = vmax.f32 %v932, 0.0
      %v950 = vmax.f32 %v935, 0.0
      %v951 = vmax.f32 %v938, 0.0
      %v952 = vmax.f32 %v941, 0.0
      %v953 = vmax.f32 %v944, 0.0
      %v955 = vsel %vm474, %v946, 0
      %v958 = vsel %vm474, %v947, 0
      %v961 = vsel %vm474, %v948, 0
      %v964 = vsel %vm474, %v949, 0
      %v967 = vsel %vm474, %v950, 0
      %v970 = vsel %vm474, %v951, 0
      %v973 = vsel %vm474, %v952, 0
      %v976 = vsel %vm474, %v953, 0
      %978 = vmatpush.msra.mxu0 0.0
      %979 = vmatpush.msra.mxu0 0.0
      %980 = vmatpush.msra.mxu0 0.0
      %981 = vmatpush.msra.mxu0 0.0
      %982 = vmatpush.msra.mxu0 0.0
      %983 = vmatpush.msra.mxu0 0.0
      %984 = vmatpush.msra.mxu0 0.0
      %985 = vmatpush.msra.mxu0 0.0
      %986 = vmatpush.msra.mxu0 0.0
      %987 = vmatpush.msra.mxu0 0.0
      %988 = vmatpush.msra.mxu0 0.0
      %989 = vmatpush.msra.mxu0 0.0
      %990 = vmatpush.msra.mxu0 0.0
      %991 = vmatpush.msra.mxu0 %v501
      %992 = vmatpush.msra.mxu0 %v232
      %993 = vmatpush.msra.mxu0 %v231
      %994 = vmatmul.f32.gmra.mxu0 %v955
      %v995 = vpop.f32.mrf.mxu0
      %v996 = vadd.f32 %v472, %v995
      %997 = vmatmul.f32.gmra.mxu0 %v958
      %v998 = vpop.f32.mrf.mxu0
      %v999 = vadd.f32 %v472, %v998
      %1000 = vmatmul.f32.gmra.mxu0 %v961
      %v1001 = vpop.f32.mrf.mxu0
      %v1002 = vadd.f32 %v472, %v1001
      %1003 = vmatmul.f32.gmra.mxu0 %v964
      %v1004 = vpop.f32.mrf.mxu0
      %v1005 = vadd.f32 %v472, %v1004
      %1006 = vmatmul.f32.gmra.mxu0 %v967
      %v1007 = vpop.f32.mrf.mxu0
      %v1008 = vadd.f32 %v472, %v1007
      %1009 = vmatmul.f32.gmra.mxu0 %v970
      %v1010 = vpop.f32.mrf.mxu0
      %v1011 = vadd.f32 %v472, %v1010
      %1012 = vmatmul.f32.gmra.mxu0 %v973
      %v1013 = vpop.f32.mrf.mxu0
      %v1014 = vadd.f32 %v472, %v1013
      %1015 = vmatmul.f32.gmra.mxu0 %v976
      %v1016 = vpop.f32.mrf.mxu0
      %v1017 = vadd.f32 %v472, %v1016
      %1018 = vdwg.mxu0
      %1019 = vst.msk [vmem:[%s226 + $0x80] sm:$0xff] %vm544, %v996
      %1020 = vst.msk [vmem:[%s226 + $0x88] sm:$0xff] %vm544, %v999
      %1021 = vst.msk [vmem:[%s226 + $0x90] sm:$0xff] %vm544, %v1002
      %1022 = vst.msk [vmem:[%s226 + $0x98] sm:$0xff] %vm544, %v1005
      %1023 = vst.msk [vmem:[%s226 + $0xa0] sm:$0xff] %vm544, %v1008
      %1024 = vst.msk [vmem:[%s226 + $0xa8] sm:$0xff] %vm544, %v1011
      %1025 = vst.msk [vmem:[%s226 + $0xb0] sm:$0xff] %vm544, %v1014
      %1026 = vst.msk [vmem:[%s226 + $0xb8] sm:$0xff] %vm544, %v1017
      %v1027 = vperm.slane %v259, 0
      %v1028 = vsub.f32 %v259, %v1027
      %v1029 = vsub.f32 %v260, %v1027
      %v1030 = vsub.f32 %v261, %v1027
      %v1031 = vsub.f32 %v262, %v1027
      %v1032 = vsub.f32 %v263, %v1027
      %v1033 = vsub.f32 %v264, %v1027
      %v1034 = vsub.f32 %v265, %v1027
      %v1035 = vsub.f32 %v266, %v1027
      %v1036 = vsel %vm308, %v1028, 0.0
      %v1037 = vsel %vm308, %v1029, 0.0
      %v1038 = vadd.f32 %v1036, %v1037
      %v1039 = vsel %vm308, %v1030, 0.0
      %v1040 = vadd.f32 %v1038, %v1039
      %v1041 = vsel %vm308, %v1031, 0.0
      %v1042 = vadd.f32 %v1040, %v1041
      %v1043 = vsel %vm308, %v1032, 0.0
      %v1044 = vadd.f32 %v1042, %v1043
      %v1045 = vsel %vm308, %v1033, 0.0
      %v1046 = vadd.f32 %v1044, %v1045
      %v1047 = vsel %vm308, %v1034, 0.0
      %v1048 = vadd.f32 %v1046, %v1047
      %v1049 = vsel %vm308, %v1035, 0.0
      %v1050 = vadd.f32 %v1048, %v1049
      %v1051 = vrot.slane %v1050, 4
      %v1052 = vadd.f32 %v1050, %v1051
      %v1053 = vrot.slane %v1052, 2
      %v1054 = vadd.f32 %v1052, %v1053
      %v1055 = vrot.slane %v1054, 1
      %v1056 = vadd.f32 %v1054, %v1055
      %v1057 = vmul.f32 %v1028, %v1028
      %v1058 = vmul.f32 %v1029, %v1029
      %v1059 = vmul.f32 %v1030, %v1030
      %v1060 = vmul.f32 %v1031, %v1031
      %v1061 = vmul.f32 %v1032, %v1032
      %v1062 = vmul.f32 %v1033, %v1033
      %v1063 = vmul.f32 %v1034, %v1034
      %v1064 = vmul.f32 %v1035, %v1035
      %v1065 = vsel %vm308, %v1057, 0.0
      %v1066 = vsel %vm308, %v1058, 0.0
      %v1067 = vadd.f32 %v1065, %v1066
      %v1068 = vsel %vm308, %v1059, 0.0
      %v1069 = vadd.f32 %v1067, %v1068
      %v1070 = vsel %vm308, %v1060, 0.0
      %v1071 = vadd.f32 %v1069, %v1070
      %v1072 = vsel %vm308, %v1061, 0.0
      %v1073 = vadd.f32 %v1071, %v1072
      %v1074 = vsel %vm308, %v1062, 0.0
      %v1075 = vadd.f32 %v1073, %v1074
      %v1076 = vsel %vm308, %v1063, 0.0
      %v1077 = vadd.f32 %v1075, %v1076
      %v1078 = vsel %vm308, %v1064, 0.0
      %v1079 = vadd.f32 %v1077, %v1078
      %v1080 = vrot.slane %v1079, 4
      %v1081 = vadd.f32 %v1079, %v1080
      %v1082 = vrot.slane %v1081, 2
      %v1083 = vadd.f32 %v1081, %v1082
      %v1084 = vrot.slane %v1083, 1
      %v1085 = vadd.f32 %v1083, %v1084
      %v1086 = vmul.f32 %v1056, 0.015625
      %v1087 = vmul.f32 %v1085, 0.015625
      %v1088 = vmul.f32 %v1086, %v1086
      %v1089 = vsub.f32 %v1087, %v1088
      %v1090 = vmax.f32 %v1089, 0.0
      %v1091 = vadd.f32 %v1090, 1e-05
      %v1092 = vrsqrt.pop %v1091
      %v1093 = vmul.f32 %v1092, %v1091
      %v1094 = vmul.f32 %v1093, %v1092
      %v1095 = vmul.f32 0.5, %v1094
      %v1096 = vsub.f32 1.5, %v1095
      %v1097 = vmul.f32 %v1092, %v1096
      %vm1098 = vweird.f32 %v1091
      %vm1099 = vweird.f32 %v1092
      %vm1100 = vmor %vm1098, %vm1099
      %v1101 = vsel %vm1100, %v1092, %v1097
      %v1102 = vsub.f32 %v1028, %v1086
      %v1103 = vsub.f32 %v1029, %v1086
      %v1104 = vsub.f32 %v1030, %v1086
      %v1105 = vsub.f32 %v1031, %v1086
      %v1106 = vsub.f32 %v1032, %v1086
      %v1107 = vsub.f32 %v1033, %v1086
      %v1108 = vsub.f32 %v1034, %v1086
      %v1109 = vsub.f32 %v1035, %v1086
      %v1110 = vmul.f32 %v1102, %v1101
      %v1111 = vmul.f32 %v1103, %v1101
      %v1112 = vmul.f32 %v1104, %v1101
      %v1113 = vmul.f32 %v1105, %v1101
      %v1114 = vmul.f32 %v1106, %v1101
      %v1115 = vmul.f32 %v1107, %v1101
      %v1116 = vmul.f32 %v1108, %v1101
      %v1117 = vmul.f32 %v1109, %v1101
      %v1119 = vsel %vm308, %v1110, 0
      %v1122 = vsel %vm308, %v1111, 0
      %v1125 = vsel %vm308, %v1112, 0
      %v1128 = vsel %vm308, %v1113, 0
      %v1131 = vsel %vm308, %v1114, 0
      %v1134 = vsel %vm308, %v1115, 0
      %v1137 = vsel %vm308, %v1116, 0
      %v1140 = vsel %vm308, %v1117, 0
      %1142 = vmatpush.msra.mxu0 0.0
      %1143 = vmatpush.msra.mxu0 0.0
      %1144 = vmatpush.msra.mxu0 0.0
      %1145 = vmatpush.msra.mxu0 0.0
      %1146 = vmatpush.msra.mxu0 0.0
      %1147 = vmatpush.msra.mxu0 0.0
      %1148 = vmatpush.msra.mxu0 0.0
      %1149 = vmatpush.msra.mxu0 0.0
      %1150 = vmatpush.msra.mxu0 0.0
      %1151 = vmatpush.msra.mxu0 0.0
      %1152 = vmatpush.msra.mxu0 0.0
      %1153 = vmatpush.msra.mxu0 0.0
      %1154 = vmatpush.msra.mxu0 0.0
      %1155 = vmatpush.msra.mxu0 0.0
      %1156 = vmatpush.msra.mxu0 %v420
      %1157 = vmatpush.msra.mxu0 %v228
      %1158 = vmatmul.f32.gmra.mxu0 %v1119
      %v1159 = vpop.f32.mrf.mxu0
      %v1160 = vadd.f32 %v392, %v1159
      %1161 = vmatmul.f32.gmra.mxu0 %v1122
      %v1162 = vpop.f32.mrf.mxu0
      %v1163 = vadd.f32 %v392, %v1162
      %1164 = vmatmul.f32.gmra.mxu0 %v1125
      %v1165 = vpop.f32.mrf.mxu0
      %v1166 = vadd.f32 %v392, %v1165
      %1167 = vmatmul.f32.gmra.mxu0 %v1128
      %v1168 = vpop.f32.mrf.mxu0
      %v1169 = vadd.f32 %v392, %v1168
      %1170 = vmatmul.f32.gmra.mxu0 %v1131
      %v1171 = vpop.f32.mrf.mxu0
      %v1172 = vadd.f32 %v392, %v1171
      %1173 = vmatmul.f32.gmra.mxu0 %v1134
      %v1174 = vpop.f32.mrf.mxu0
      %v1175 = vadd.f32 %v392, %v1174
      %1176 = vmatmul.f32.gmra.mxu0 %v1137
      %v1177 = vpop.f32.mrf.mxu0
      %v1178 = vadd.f32 %v392, %v1177
      %1179 = vmatmul.f32.gmra.mxu0 %v1140
      %v1180 = vpop.f32.mrf.mxu0
      %v1181 = vadd.f32 %v392, %v1180
      %1182 = vdwg.mxu0
      %v1183 = vmax.f32 %v1160, 0.0
      %v1184 = vmax.f32 %v1163, 0.0
      %v1185 = vmax.f32 %v1166, 0.0
      %v1186 = vmax.f32 %v1169, 0.0
      %v1187 = vmax.f32 %v1172, 0.0
      %v1188 = vmax.f32 %v1175, 0.0
      %v1189 = vmax.f32 %v1178, 0.0
      %v1190 = vmax.f32 %v1181, 0.0
      %v1192 = vsel %vm474, %v1183, 0
      %v1195 = vsel %vm474, %v1184, 0
      %v1198 = vsel %vm474, %v1185, 0
      %v1201 = vsel %vm474, %v1186, 0
      %v1204 = vsel %vm474, %v1187, 0
      %v1207 = vsel %vm474, %v1188, 0
      %v1210 = vsel %vm474, %v1189, 0
      %v1213 = vsel %vm474, %v1190, 0
      %1215 = vmatpush.msra.mxu0 0.0
      %1216 = vmatpush.msra.mxu0 0.0
      %1217 = vmatpush.msra.mxu0 0.0
      %1218 = vmatpush.msra.mxu0 0.0
      %1219 = vmatpush.msra.mxu0 0.0
      %1220 = vmatpush.msra.mxu0 0.0
      %1221 = vmatpush.msra.mxu0 0.0
      %1222 = vmatpush.msra.mxu0 0.0
      %1223 = vmatpush.msra.mxu0 0.0
      %1224 = vmatpush.msra.mxu0 0.0
      %1225 = vmatpush.msra.mxu0 0.0
      %1226 = vmatpush.msra.mxu0 0.0
      %1227 = vmatpush.msra.mxu0 0.0
      %1228 = vmatpush.msra.mxu0 %v501
      %1229 = vmatpush.msra.mxu0 %v232
      %1230 = vmatpush.msra.mxu0 %v231
      %1231 = vmatmul.f32.gmra.mxu0 %v1192
      %v1232 = vpop.f32.mrf.mxu0
      %v1233 = vadd.f32 %v472, %v1232
      %1234 = vmatmul.f32.gmra.mxu0 %v1195
      %v1235 = vpop.f32.mrf.mxu0
      %v1236 = vadd.f32 %v472, %v1235
      %1237 = vmatmul.f32.gmra.mxu0 %v1198
      %v1238 = vpop.f32.mrf.mxu0
      %v1239 = vadd.f32 %v472, %v1238
      %1240 = vmatmul.f32.gmra.mxu0 %v1201
      %v1241 = vpop.f32.mrf.mxu0
      %v1242 = vadd.f32 %v472, %v1241
      %1243 = vmatmul.f32.gmra.mxu0 %v1204
      %v1244 = vpop.f32.mrf.mxu0
      %v1245 = vadd.f32 %v472, %v1244
      %1246 = vmatmul.f32.gmra.mxu0 %v1207
      %v1247 = vpop.f32.mrf.mxu0
      %v1248 = vadd.f32 %v472, %v1247
      %1249 = vmatmul.f32.gmra.mxu0 %v1210
      %v1250 = vpop.f32.mrf.mxu0
      %v1251 = vadd.f32 %v472, %v1250
      %1252 = vmatmul.f32.gmra.mxu0 %v1213
      %v1253 = vpop.f32.mrf.mxu0
      %v1254 = vadd.f32 %v472, %v1253
      %1255 = vdwg.mxu0
      %1256 = vst.msk [vmem:[%s226 + $0xc0] sm:$0xff] %vm544, %v1233
      %1257 = vst.msk [vmem:[%s226 + $0xc8] sm:$0xff] %vm544, %v1236
      %1258 = vst.msk [vmem:[%s226 + $0xd0] sm:$0xff] %vm544, %v1239
      %1259 = vst.msk [vmem:[%s226 + $0xd8] sm:$0xff] %vm544, %v1242
      %1260 = vst.msk [vmem:[%s226 + $0xe0] sm:$0xff] %vm544, %v1245
      %1261 = vst.msk [vmem:[%s226 + $0xe8] sm:$0xff] %vm544, %v1248
      %1262 = vst.msk [vmem:[%s226 + $0xf0] sm:$0xff] %vm544, %v1251
      %1263 = vst.msk [vmem:[%s226 + $0xf8] sm:$0xff] %vm544, %v1254
      %v1264 = vperm.slane %v267, 0
      %v1265 = vsub.f32 %v267, %v1264
      %v1266 = vsub.f32 %v268, %v1264
      %v1267 = vsub.f32 %v269, %v1264
      %v1268 = vsub.f32 %v270, %v1264
      %v1269 = vsub.f32 %v271, %v1264
      %v1270 = vsub.f32 %v272, %v1264
      %v1271 = vsub.f32 %v273, %v1264
      %v1272 = vsub.f32 %v274, %v1264
      %v1273 = vsel %vm308, %v1265, 0.0
      %v1274 = vsel %vm308, %v1266, 0.0
      %v1275 = vadd.f32 %v1273, %v1274
      %v1276 = vsel %vm308, %v1267, 0.0
      %v1277 = vadd.f32 %v1275, %v1276
      %v1278 = vsel %vm308, %v1268, 0.0
      %v1279 = vadd.f32 %v1277, %v1278
      %v1280 = vsel %vm308, %v1269, 0.0
      %v1281 = vadd.f32 %v1279, %v1280
      %v1282 = vsel %vm308, %v1270, 0.0
      %v1283 = vadd.f32 %v1281, %v1282
      %v1284 = vsel %vm308, %v1271, 0.0
      %v1285 = vadd.f32 %v1283, %v1284
      %v1286 = vsel %vm308, %v1272, 0.0
      %v1287 = vadd.f32 %v1285, %v1286
      %v1288 = vrot.slane %v1287, 4
      %v1289 = vadd.f32 %v1287, %v1288
      %v1290 = vrot.slane %v1289, 2
      %v1291 = vadd.f32 %v1289, %v1290
      %v1292 = vrot.slane %v1291, 1
      %v1293 = vadd.f32 %v1291, %v1292
      %v1294 = vmul.f32 %v1265, %v1265
      %v1295 = vmul.f32 %v1266, %v1266
      %v1296 = vmul.f32 %v1267, %v1267
      %v1297 = vmul.f32 %v1268, %v1268
      %v1298 = vmul.f32 %v1269, %v1269
      %v1299 = vmul.f32 %v1270, %v1270
      %v1300 = vmul.f32 %v1271, %v1271
      %v1301 = vmul.f32 %v1272, %v1272
      %v1302 = vsel %vm308, %v1294, 0.0
      %v1303 = vsel %vm308, %v1295, 0.0
      %v1304 = vadd.f32 %v1302, %v1303
      %v1305 = vsel %vm308, %v1296, 0.0
      %v1306 = vadd.f32 %v1304, %v1305
      %v1307 = vsel %vm308, %v1297, 0.0
      %v1308 = vadd.f32 %v1306, %v1307
      %v1309 = vsel %vm308, %v1298, 0.0
      %v1310 = vadd.f32 %v1308, %v1309
      %v1311 = vsel %vm308, %v1299, 0.0
      %v1312 = vadd.f32 %v1310, %v1311
      %v1313 = vsel %vm308, %v1300, 0.0
      %v1314 = vadd.f32 %v1312, %v1313
      %v1315 = vsel %vm308, %v1301, 0.0
      %v1316 = vadd.f32 %v1314, %v1315
      %v1317 = vrot.slane %v1316, 4
      %v1318 = vadd.f32 %v1316, %v1317
      %v1319 = vrot.slane %v1318, 2
      %v1320 = vadd.f32 %v1318, %v1319
      %v1321 = vrot.slane %v1320, 1
      %v1322 = vadd.f32 %v1320, %v1321
      %v1323 = vmul.f32 %v1293, 0.015625
      %v1324 = vmul.f32 %v1322, 0.015625
      %v1325 = vmul.f32 %v1323, %v1323
      %v1326 = vsub.f32 %v1324, %v1325
      %v1327 = vmax.f32 %v1326, 0.0
      %v1328 = vadd.f32 %v1327, 1e-05
      %v1329 = vrsqrt.pop %v1328
      %v1330 = vmul.f32 %v1329, %v1328
      %v1331 = vmul.f32 %v1330, %v1329
      %v1332 = vmul.f32 0.5, %v1331
      %v1333 = vsub.f32 1.5, %v1332
      %v1334 = vmul.f32 %v1329, %v1333
      %vm1335 = vweird.f32 %v1328
      %vm1336 = vweird.f32 %v1329
      %vm1337 = vmor %vm1335, %vm1336
      %v1338 = vsel %vm1337, %v1329, %v1334
      %v1339 = vsub.f32 %v1265, %v1323
      %v1340 = vsub.f32 %v1266, %v1323
      %v1341 = vsub.f32 %v1267, %v1323
      %v1342 = vsub.f32 %v1268, %v1323
      %v1343 = vsub.f32 %v1269, %v1323
      %v1344 = vsub.f32 %v1270, %v1323
      %v1345 = vsub.f32 %v1271, %v1323
      %v1346 = vsub.f32 %v1272, %v1323
      %v1347 = vmul.f32 %v1339, %v1338
      %v1348 = vmul.f32 %v1340, %v1338
      %v1349 = vmul.f32 %v1341, %v1338
      %v1350 = vmul.f32 %v1342, %v1338
      %v1351 = vmul.f32 %v1343, %v1338
      %v1352 = vmul.f32 %v1344, %v1338
      %v1353 = vmul.f32 %v1345, %v1338
      %v1354 = vmul.f32 %v1346, %v1338
      %v1356 = vsel %vm308, %v1347, 0
      %v1359 = vsel %vm308, %v1348, 0
      %v1362 = vsel %vm308, %v1349, 0
      %v1365 = vsel %vm308, %v1350, 0
      %v1368 = vsel %vm308, %v1351, 0
      %v1371 = vsel %vm308, %v1352, 0
      %v1374 = vsel %vm308, %v1353, 0
      %v1377 = vsel %vm308, %v1354, 0
      %1379 = vmatpush.msra.mxu0 0.0
      %1380 = vmatpush.msra.mxu0 0.0
      %1381 = vmatpush.msra.mxu0 0.0
      %1382 = vmatpush.msra.mxu0 0.0
      %1383 = vmatpush.msra.mxu0 0.0
      %1384 = vmatpush.msra.mxu0 0.0
      %1385 = vmatpush.msra.mxu0 0.0
      %1386 = vmatpush.msra.mxu0 0.0
      %1387 = vmatpush.msra.mxu0 0.0
      %1388 = vmatpush.msra.mxu0 0.0
      %1389 = vmatpush.msra.mxu0 0.0
      %1390 = vmatpush.msra.mxu0 0.0
      %1391 = vmatpush.msra.mxu0 0.0
      %1392 = vmatpush.msra.mxu0 0.0
      %1393 = vmatpush.msra.mxu0 %v420
      %1394 = vmatpush.msra.mxu0 %v228
      %1395 = vmatmul.f32.gmra.mxu0 %v1356
      %v1396 = vpop.f32.mrf.mxu0
      %v1397 = vadd.f32 %v392, %v1396
      %1398 = vmatmul.f32.gmra.mxu0 %v1359
      %v1399 = vpop.f32.mrf.mxu0
      %v1400 = vadd.f32 %v392, %v1399
      %1401 = vmatmul.f32.gmra.mxu0 %v1362
      %v1402 = vpop.f32.mrf.mxu0
      %v1403 = vadd.f32 %v392, %v1402
      %1404 = vmatmul.f32.gmra.mxu0 %v1365
      %v1405 = vpop.f32.mrf.mxu0
      %v1406 = vadd.f32 %v392, %v1405
      %1407 = vmatmul.f32.gmra.mxu0 %v1368
      %v1408 = vpop.f32.mrf.mxu0
      %v1409 = vadd.f32 %v392, %v1408
      %1410 = vmatmul.f32.gmra.mxu0 %v1371
      %v1411 = vpop.f32.mrf.mxu0
      %v1412 = vadd.f32 %v392, %v1411
      %1413 = vmatmul.f32.gmra.mxu0 %v1374
      %v1414 = vpop.f32.mrf.mxu0
      %v1415 = vadd.f32 %v392, %v1414
      %1416 = vmatmul.f32.gmra.mxu0 %v1377
      %v1417 = vpop.f32.mrf.mxu0
      %v1418 = vadd.f32 %v392, %v1417
      %1419 = vdwg.mxu0
      %v1420 = vmax.f32 %v1397, 0.0
      %v1421 = vmax.f32 %v1400, 0.0
      %v1422 = vmax.f32 %v1403, 0.0
      %v1423 = vmax.f32 %v1406, 0.0
      %v1424 = vmax.f32 %v1409, 0.0
      %v1425 = vmax.f32 %v1412, 0.0
      %v1426 = vmax.f32 %v1415, 0.0
      %v1427 = vmax.f32 %v1418, 0.0
      %v1429 = vsel %vm474, %v1420, 0
      %v1432 = vsel %vm474, %v1421, 0
      %v1435 = vsel %vm474, %v1422, 0
      %v1438 = vsel %vm474, %v1423, 0
      %v1441 = vsel %vm474, %v1424, 0
      %v1444 = vsel %vm474, %v1425, 0
      %v1447 = vsel %vm474, %v1426, 0
      %v1450 = vsel %vm474, %v1427, 0
      %1452 = vmatpush.msra.mxu0 0.0
      %1453 = vmatpush.msra.mxu0 0.0
      %1454 = vmatpush.msra.mxu0 0.0
      %1455 = vmatpush.msra.mxu0 0.0
      %1456 = vmatpush.msra.mxu0 0.0
      %1457 = vmatpush.msra.mxu0 0.0
      %1458 = vmatpush.msra.mxu0 0.0
      %1459 = vmatpush.msra.mxu0 0.0
      %1460 = vmatpush.msra.mxu0 0.0
      %1461 = vmatpush.msra.mxu0 0.0
      %1462 = vmatpush.msra.mxu0 0.0
      %1463 = vmatpush.msra.mxu0 0.0
      %1464 = vmatpush.msra.mxu0 0.0
      %1465 = vmatpush.msra.mxu0 %v501
      %1466 = vmatpush.msra.mxu0 %v232
      %1467 = vmatpush.msra.mxu0 %v231
      %1468 = vmatmul.f32.gmra.mxu0 %v1429
      %v1469 = vpop.f32.mrf.mxu0
      %v1470 = vadd.f32 %v472, %v1469
      %1471 = vmatmul.f32.gmra.mxu0 %v1432
      %v1472 = vpop.f32.mrf.mxu0
      %v1473 = vadd.f32 %v472, %v1472
      %1474 = vmatmul.f32.gmra.mxu0 %v1435
      %v1475 = vpop.f32.mrf.mxu0
      %v1476 = vadd.f32 %v472, %v1475
      %1477 = vmatmul.f32.gmra.mxu0 %v1438
      %v1478 = vpop.f32.mrf.mxu0
      %v1479 = vadd.f32 %v472, %v1478
      %1480 = vmatmul.f32.gmra.mxu0 %v1441
      %v1481 = vpop.f32.mrf.mxu0
      %v1482 = vadd.f32 %v472, %v1481
      %1483 = vmatmul.f32.gmra.mxu0 %v1444
      %v1484 = vpop.f32.mrf.mxu0
      %v1485 = vadd.f32 %v472, %v1484
      %1486 = vmatmul.f32.gmra.mxu0 %v1447
      %v1487 = vpop.f32.mrf.mxu0
      %v1488 = vadd.f32 %v472, %v1487
      %1489 = vmatmul.f32.gmra.mxu0 %v1450
      %v1490 = vpop.f32.mrf.mxu0
      %v1491 = vadd.f32 %v472, %v1490
      %1492 = vdwg.mxu0
      %1493 = vst.msk [vmem:[%s226 + $0x100] sm:$0xff] %vm544, %v1470
      %1494 = vst.msk [vmem:[%s226 + $0x108] sm:$0xff] %vm544, %v1473
      %1495 = vst.msk [vmem:[%s226 + $0x110] sm:$0xff] %vm544, %v1476
      %1496 = vst.msk [vmem:[%s226 + $0x118] sm:$0xff] %vm544, %v1479
      %1497 = vst.msk [vmem:[%s226 + $0x120] sm:$0xff] %vm544, %v1482
      %1498 = vst.msk [vmem:[%s226 + $0x128] sm:$0xff] %vm544, %v1485
      %1499 = vst.msk [vmem:[%s226 + $0x130] sm:$0xff] %vm544, %v1488
      %1500 = vst.msk [vmem:[%s226 + $0x138] sm:$0xff] %vm544, %v1491
      %v1501 = vperm.slane %v275, 0
      %v1502 = vsub.f32 %v275, %v1501
      %v1503 = vsub.f32 %v276, %v1501
      %v1504 = vsub.f32 %v277, %v1501
      %v1505 = vsub.f32 %v278, %v1501
      %v1506 = vsub.f32 %v279, %v1501
      %v1507 = vsub.f32 %v280, %v1501
      %v1508 = vsub.f32 %v281, %v1501
      %v1509 = vsub.f32 %v282, %v1501
      %v1510 = vsel %vm308, %v1502, 0.0
      %v1511 = vsel %vm308, %v1503, 0.0
      %v1512 = vadd.f32 %v1510, %v1511
      %v1513 = vsel %vm308, %v1504, 0.0
      %v1514 = vadd.f32 %v1512, %v1513
      %v1515 = vsel %vm308, %v1505, 0.0
      %v1516 = vadd.f32 %v1514, %v1515
      %v1517 = vsel %vm308, %v1506, 0.0
      %v1518 = vadd.f32 %v1516, %v1517
      %v1519 = vsel %vm308, %v1507, 0.0
      %v1520 = vadd.f32 %v1518, %v1519
      %v1521 = vsel %vm308, %v1508, 0.0
      %v1522 = vadd.f32 %v1520, %v1521
      %v1523 = vsel %vm308, %v1509, 0.0
      %v1524 = vadd.f32 %v1522, %v1523
      %v1525 = vrot.slane %v1524, 4
      %v1526 = vadd.f32 %v1524, %v1525
      %v1527 = vrot.slane %v1526, 2
      %v1528 = vadd.f32 %v1526, %v1527
      %v1529 = vrot.slane %v1528, 1
      %v1530 = vadd.f32 %v1528, %v1529
      %v1531 = vmul.f32 %v1502, %v1502
      %v1532 = vmul.f32 %v1503, %v1503
      %v1533 = vmul.f32 %v1504, %v1504
      %v1534 = vmul.f32 %v1505, %v1505
      %v1535 = vmul.f32 %v1506, %v1506
      %v1536 = vmul.f32 %v1507, %v1507
      %v1537 = vmul.f32 %v1508, %v1508
      %v1538 = vmul.f32 %v1509, %v1509
      %v1539 = vsel %vm308, %v1531, 0.0
      %v1540 = vsel %vm308, %v1532, 0.0
      %v1541 = vadd.f32 %v1539, %v1540
      %v1542 = vsel %vm308, %v1533, 0.0
      %v1543 = vadd.f32 %v1541, %v1542
      %v1544 = vsel %vm308, %v1534, 0.0
      %v1545 = vadd.f32 %v1543, %v1544
      %v1546 = vsel %vm308, %v1535, 0.0
      %v1547 = vadd.f32 %v1545, %v1546
      %v1548 = vsel %vm308, %v1536, 0.0
      %v1549 = vadd.f32 %v1547, %v1548
      %v1550 = vsel %vm308, %v1537, 0.0
      %v1551 = vadd.f32 %v1549, %v1550
      %v1552 = vsel %vm308, %v1538, 0.0
      %v1553 = vadd.f32 %v1551, %v1552
      %v1554 = vrot.slane %v1553, 4
      %v1555 = vadd.f32 %v1553, %v1554
      %v1556 = vrot.slane %v1555, 2
      %v1557 = vadd.f32 %v1555, %v1556
      %v1558 = vrot.slane %v1557, 1
      %v1559 = vadd.f32 %v1557, %v1558
      %v1560 = vmul.f32 %v1530, 0.015625
      %v1561 = vmul.f32 %v1559, 0.015625
      %v1562 = vmul.f32 %v1560, %v1560
      %v1563 = vsub.f32 %v1561, %v1562
      %v1564 = vmax.f32 %v1563, 0.0
      %v1565 = vadd.f32 %v1564, 1e-05
      %v1566 = vrsqrt.pop %v1565
      %v1567 = vmul.f32 %v1566, %v1565
      %v1568 = vmul.f32 %v1567, %v1566
      %v1569 = vmul.f32 0.5, %v1568
      %v1570 = vsub.f32 1.5, %v1569
      %v1571 = vmul.f32 %v1566, %v1570
      %vm1572 = vweird.f32 %v1565
      %vm1573 = vweird.f32 %v1566
      %vm1574 = vmor %vm1572, %vm1573
      %v1575 = vsel %vm1574, %v1566, %v1571
      %v1576 = vsub.f32 %v1502, %v1560
      %v1577 = vsub.f32 %v1503, %v1560
      %v1578 = vsub.f32 %v1504, %v1560
      %v1579 = vsub.f32 %v1505, %v1560
      %v1580 = vsub.f32 %v1506, %v1560
      %v1581 = vsub.f32 %v1507, %v1560
      %v1582 = vsub.f32 %v1508, %v1560
      %v1583 = vsub.f32 %v1509, %v1560
      %v1584 = vmul.f32 %v1576, %v1575
      %v1585 = vmul.f32 %v1577, %v1575
      %v1586 = vmul.f32 %v1578, %v1575
      %v1587 = vmul.f32 %v1579, %v1575
      %v1588 = vmul.f32 %v1580, %v1575
      %v1589 = vmul.f32 %v1581, %v1575
      %v1590 = vmul.f32 %v1582, %v1575
      %v1591 = vmul.f32 %v1583, %v1575
      %v1593 = vsel %vm308, %v1584, 0
      %v1596 = vsel %vm308, %v1585, 0
      %v1599 = vsel %vm308, %v1586, 0
      %v1602 = vsel %vm308, %v1587, 0
      %v1605 = vsel %vm308, %v1588, 0
      %v1608 = vsel %vm308, %v1589, 0
      %v1611 = vsel %vm308, %v1590, 0
      %v1614 = vsel %vm308, %v1591, 0
      %1616 = vmatpush.msra.mxu0 0.0
      %1617 = vmatpush.msra.mxu0 0.0
      %1618 = vmatpush.msra.mxu0 0.0
      %1619 = vmatpush.msra.mxu0 0.0
      %1620 = vmatpush.msra.mxu0 0.0
      %1621 = vmatpush.msra.mxu0 0.0
      %1622 = vmatpush.msra.mxu0 0.0
      %1623 = vmatpush.msra.mxu0 0.0
      %1624 = vmatpush.msra.mxu0 0.0
      %1625 = vmatpush.msra.mxu0 0.0
      %1626 = vmatpush.msra.mxu0 0.0
      %1627 = vmatpush.msra.mxu0 0.0
      %1628 = vmatpush.msra.mxu0 0.0
      %1629 = vmatpush.msra.mxu0 0.0
      %1630 = vmatpush.msra.mxu0 %v420
      %1631 = vmatpush.msra.mxu0 %v228
      %1632 = vmatmul.f32.gmra.mxu0 %v1593
      %v1633 = vpop.f32.mrf.mxu0
      %v1634 = vadd.f32 %v392, %v1633
      %1635 = vmatmul.f32.gmra.mxu0 %v1596
      %v1636 = vpop.f32.mrf.mxu0
      %v1637 = vadd.f32 %v392, %v1636
      %1638 = vmatmul.f32.gmra.mxu0 %v1599
      %v1639 = vpop.f32.mrf.mxu0
      %v1640 = vadd.f32 %v392, %v1639
      %1641 = vmatmul.f32.gmra.mxu0 %v1602
      %v1642 = vpop.f32.mrf.mxu0
      %v1643 = vadd.f32 %v392, %v1642
      %1644 = vmatmul.f32.gmra.mxu0 %v1605
      %v1645 = vpop.f32.mrf.mxu0
      %v1646 = vadd.f32 %v392, %v1645
      %1647 = vmatmul.f32.gmra.mxu0 %v1608
      %v1648 = vpop.f32.mrf.mxu0
      %v1649 = vadd.f32 %v392, %v1648
      %1650 = vmatmul.f32.gmra.mxu0 %v1611
      %v1651 = vpop.f32.mrf.mxu0
      %v1652 = vadd.f32 %v392, %v1651
      %1653 = vmatmul.f32.gmra.mxu0 %v1614
      %v1654 = vpop.f32.mrf.mxu0
      %v1655 = vadd.f32 %v392, %v1654
      %1656 = vdwg.mxu0
      %v1657 = vmax.f32 %v1634, 0.0
      %v1658 = vmax.f32 %v1637, 0.0
      %v1659 = vmax.f32 %v1640, 0.0
      %v1660 = vmax.f32 %v1643, 0.0
      %v1661 = vmax.f32 %v1646, 0.0
      %v1662 = vmax.f32 %v1649, 0.0
      %v1663 = vmax.f32 %v1652, 0.0
      %v1664 = vmax.f32 %v1655, 0.0
      %v1666 = vsel %vm474, %v1657, 0
      %v1669 = vsel %vm474, %v1658, 0
      %v1672 = vsel %vm474, %v1659, 0
      %v1675 = vsel %vm474, %v1660, 0
      %v1678 = vsel %vm474, %v1661, 0
      %v1681 = vsel %vm474, %v1662, 0
      %v1684 = vsel %vm474, %v1663, 0
      %v1687 = vsel %vm474, %v1664, 0
      %1689 = vmatpush.msra.mxu0 0.0
      %1690 = vmatpush.msra.mxu0 0.0
      %1691 = vmatpush.msra.mxu0 0.0
      %1692 = vmatpush.msra.mxu0 0.0
      %1693 = vmatpush.msra.mxu0 0.0
      %1694 = vmatpush.msra.mxu0 0.0
      %1695 = vmatpush.msra.mxu0 0.0
      %1696 = vmatpush.msra.mxu0 0.0
      %1697 = vmatpush.msra.mxu0 0.0
      %1698 = vmatpush.msra.mxu0 0.0
      %1699 = vmatpush.msra.mxu0 0.0
      %1700 = vmatpush.msra.mxu0 0.0
      %1701 = vmatpush.msra.mxu0 0.0
      %1702 = vmatpush.msra.mxu0 %v501
      %1703 = vmatpush.msra.mxu0 %v232
      %1704 = vmatpush.msra.mxu0 %v231
      %1705 = vmatmul.f32.gmra.mxu0 %v1666
      %v1706 = vpop.f32.mrf.mxu0
      %v1707 = vadd.f32 %v472, %v1706
      %1708 = vmatmul.f32.gmra.mxu0 %v1669
      %v1709 = vpop.f32.mrf.mxu0
      %v1710 = vadd.f32 %v472, %v1709
      %1711 = vmatmul.f32.gmra.mxu0 %v1672
      %v1712 = vpop.f32.mrf.mxu0
      %v1713 = vadd.f32 %v472, %v1712
      %1714 = vmatmul.f32.gmra.mxu0 %v1675
      %v1715 = vpop.f32.mrf.mxu0
      %v1716 = vadd.f32 %v472, %v1715
      %1717 = vmatmul.f32.gmra.mxu0 %v1678
      %v1718 = vpop.f32.mrf.mxu0
      %v1719 = vadd.f32 %v472, %v1718
      %1720 = vmatmul.f32.gmra.mxu0 %v1681
      %v1721 = vpop.f32.mrf.mxu0
      %v1722 = vadd.f32 %v472, %v1721
      %1723 = vmatmul.f32.gmra.mxu0 %v1684
      %v1724 = vpop.f32.mrf.mxu0
      %v1725 = vadd.f32 %v472, %v1724
      %1726 = vmatmul.f32.gmra.mxu0 %v1687
      %v1727 = vpop.f32.mrf.mxu0
      %v1728 = vadd.f32 %v472, %v1727
      %1729 = vdwg.mxu0
      %1730 = vst.msk [vmem:[%s226 + $0x140] sm:$0xff] %vm544, %v1707
      %1731 = vst.msk [vmem:[%s226 + $0x148] sm:$0xff] %vm544, %v1710
      %1732 = vst.msk [vmem:[%s226 + $0x150] sm:$0xff] %vm544, %v1713
      %1733 = vst.msk [vmem:[%s226 + $0x158] sm:$0xff] %vm544, %v1716
      %1734 = vst.msk [vmem:[%s226 + $0x160] sm:$0xff] %vm544, %v1719
      %1735 = vst.msk [vmem:[%s226 + $0x168] sm:$0xff] %vm544, %v1722
      %1736 = vst.msk [vmem:[%s226 + $0x170] sm:$0xff] %vm544, %v1725
      %1737 = vst.msk [vmem:[%s226 + $0x178] sm:$0xff] %vm544, %v1728
      %v1738 = vperm.slane %v283, 0
      %v1739 = vsub.f32 %v283, %v1738
      %v1740 = vsub.f32 %v284, %v1738
      %v1741 = vsub.f32 %v285, %v1738
      %v1742 = vsub.f32 %v286, %v1738
      %v1743 = vsub.f32 %v287, %v1738
      %v1744 = vsub.f32 %v288, %v1738
      %v1745 = vsub.f32 %v289, %v1738
      %v1746 = vsub.f32 %v290, %v1738
      %v1747 = vsel %vm308, %v1739, 0.0
      %v1748 = vsel %vm308, %v1740, 0.0
      %v1749 = vadd.f32 %v1747, %v1748
      %v1750 = vsel %vm308, %v1741, 0.0
      %v1751 = vadd.f32 %v1749, %v1750
      %v1752 = vsel %vm308, %v1742, 0.0
      %v1753 = vadd.f32 %v1751, %v1752
      %v1754 = vsel %vm308, %v1743, 0.0
      %v1755 = vadd.f32 %v1753, %v1754
      %v1756 = vsel %vm308, %v1744, 0.0
      %v1757 = vadd.f32 %v1755, %v1756
      %v1758 = vsel %vm308, %v1745, 0.0
      %v1759 = vadd.f32 %v1757, %v1758
      %v1760 = vsel %vm308, %v1746, 0.0
      %v1761 = vadd.f32 %v1759, %v1760
      %v1762 = vrot.slane %v1761, 4
      %v1763 = vadd.f32 %v1761, %v1762
      %v1764 = vrot.slane %v1763, 2
      %v1765 = vadd.f32 %v1763, %v1764
      %v1766 = vrot.slane %v1765, 1
      %v1767 = vadd.f32 %v1765, %v1766
      %v1768 = vmul.f32 %v1739, %v1739
      %v1769 = vmul.f32 %v1740, %v1740
      %v1770 = vmul.f32 %v1741, %v1741
      %v1771 = vmul.f32 %v1742, %v1742
      %v1772 = vmul.f32 %v1743, %v1743
      %v1773 = vmul.f32 %v1744, %v1744
      %v1774 = vmul.f32 %v1745, %v1745
      %v1775 = vmul.f32 %v1746, %v1746
      %v1776 = vsel %vm308, %v1768, 0.0
      %v1777 = vsel %vm308, %v1769, 0.0
      %v1778 = vadd.f32 %v1776, %v1777
      %v1779 = vsel %vm308, %v1770, 0.0
      %v1780 = vadd.f32 %v1778, %v1779
      %v1781 = vsel %vm308, %v1771, 0.0
      %v1782 = vadd.f32 %v1780, %v1781
      %v1783 = vsel %vm308, %v1772, 0.0
      %v1784 = vadd.f32 %v1782, %v1783
      %v1785 = vsel %vm308, %v1773, 0.0
      %v1786 = vadd.f32 %v1784, %v1785
      %v1787 = vsel %vm308, %v1774, 0.0
      %v1788 = vadd.f32 %v1786, %v1787
      %v1789 = vsel %vm308, %v1775, 0.0
      %v1790 = vadd.f32 %v1788, %v1789
      %v1791 = vrot.slane %v1790, 4
      %v1792 = vadd.f32 %v1790, %v1791
      %v1793 = vrot.slane %v1792, 2
      %v1794 = vadd.f32 %v1792, %v1793
      %v1795 = vrot.slane %v1794, 1
      %v1796 = vadd.f32 %v1794, %v1795
      %v1797 = vmul.f32 %v1767, 0.015625
      %v1798 = vmul.f32 %v1796, 0.015625
      %v1799 = vmul.f32 %v1797, %v1797
      %v1800 = vsub.f32 %v1798, %v1799
      %v1801 = vmax.f32 %v1800, 0.0
      %v1802 = vadd.f32 %v1801, 1e-05
      %v1803 = vrsqrt.pop %v1802
      %v1804 = vmul.f32 %v1803, %v1802
      %v1805 = vmul.f32 %v1804, %v1803
      %v1806 = vmul.f32 0.5, %v1805
      %v1807 = vsub.f32 1.5, %v1806
      %v1808 = vmul.f32 %v1803, %v1807
      %vm1809 = vweird.f32 %v1802
      %vm1810 = vweird.f32 %v1803
      %vm1811 = vmor %vm1809, %vm1810
      %v1812 = vsel %vm1811, %v1803, %v1808
      %v1813 = vsub.f32 %v1739, %v1797
      %v1814 = vsub.f32 %v1740, %v1797
      %v1815 = vsub.f32 %v1741, %v1797
      %v1816 = vsub.f32 %v1742, %v1797
      %v1817 = vsub.f32 %v1743, %v1797
      %v1818 = vsub.f32 %v1744, %v1797
      %v1819 = vsub.f32 %v1745, %v1797
      %v1820 = vsub.f32 %v1746, %v1797
      %v1821 = vmul.f32 %v1813, %v1812
      %v1822 = vmul.f32 %v1814, %v1812
      %v1823 = vmul.f32 %v1815, %v1812
      %v1824 = vmul.f32 %v1816, %v1812
      %v1825 = vmul.f32 %v1817, %v1812
      %v1826 = vmul.f32 %v1818, %v1812
      %v1827 = vmul.f32 %v1819, %v1812
      %v1828 = vmul.f32 %v1820, %v1812
      %v1830 = vsel %vm308, %v1821, 0
      %v1833 = vsel %vm308, %v1822, 0
      %v1836 = vsel %vm308, %v1823, 0
      %v1839 = vsel %vm308, %v1824, 0
      %v1842 = vsel %vm308, %v1825, 0
      %v1845 = vsel %vm308, %v1826, 0
      %v1848 = vsel %vm308, %v1827, 0
      %v1851 = vsel %vm308, %v1828, 0
      %1853 = vmatpush.msra.mxu0 0.0
      %1854 = vmatpush.msra.mxu0 0.0
      %1855 = vmatpush.msra.mxu0 0.0
      %1856 = vmatpush.msra.mxu0 0.0
      %1857 = vmatpush.msra.mxu0 0.0
      %1858 = vmatpush.msra.mxu0 0.0
      %1859 = vmatpush.msra.mxu0 0.0
      %1860 = vmatpush.msra.mxu0 0.0
      %1861 = vmatpush.msra.mxu0 0.0
      %1862 = vmatpush.msra.mxu0 0.0
      %1863 = vmatpush.msra.mxu0 0.0
      %1864 = vmatpush.msra.mxu0 0.0
      %1865 = vmatpush.msra.mxu0 0.0
      %1866 = vmatpush.msra.mxu0 0.0
      %1867 = vmatpush.msra.mxu0 %v420
      %1868 = vmatpush.msra.mxu0 %v228
      %1869 = vmatmul.f32.gmra.mxu0 %v1830
      %v1870 = vpop.f32.mrf.mxu0
      %v1871 = vadd.f32 %v392, %v1870
      %1872 = vmatmul.f32.gmra.mxu0 %v1833
      %v1873 = vpop.f32.mrf.mxu0
      %v1874 = vadd.f32 %v392, %v1873
      %1875 = vmatmul.f32.gmra.mxu0 %v1836
      %v1876 = vpop.f32.mrf.mxu0
      %v1877 = vadd.f32 %v392, %v1876
      %1878 = vmatmul.f32.gmra.mxu0 %v1839
      %v1879 = vpop.f32.mrf.mxu0
      %v1880 = vadd.f32 %v392, %v1879
      %1881 = vmatmul.f32.gmra.mxu0 %v1842
      %v1882 = vpop.f32.mrf.mxu0
      %v1883 = vadd.f32 %v392, %v1882
      %1884 = vmatmul.f32.gmra.mxu0 %v1845
      %v1885 = vpop.f32.mrf.mxu0
      %v1886 = vadd.f32 %v392, %v1885
      %1887 = vmatmul.f32.gmra.mxu0 %v1848
      %v1888 = vpop.f32.mrf.mxu0
      %v1889 = vadd.f32 %v392, %v1888
      %1890 = vmatmul.f32.gmra.mxu0 %v1851
      %v1891 = vpop.f32.mrf.mxu0
      %v1892 = vadd.f32 %v392, %v1891
      %1893 = vdwg.mxu0
      %v1894 = vmax.f32 %v1871, 0.0
      %v1895 = vmax.f32 %v1874, 0.0
      %v1896 = vmax.f32 %v1877, 0.0
      %v1897 = vmax.f32 %v1880, 0.0
      %v1898 = vmax.f32 %v1883, 0.0
      %v1899 = vmax.f32 %v1886, 0.0
      %v1900 = vmax.f32 %v1889, 0.0
      %v1901 = vmax.f32 %v1892, 0.0
      %v1903 = vsel %vm474, %v1894, 0
      %v1906 = vsel %vm474, %v1895, 0
      %v1909 = vsel %vm474, %v1896, 0
      %v1912 = vsel %vm474, %v1897, 0
      %v1915 = vsel %vm474, %v1898, 0
      %v1918 = vsel %vm474, %v1899, 0
      %v1921 = vsel %vm474, %v1900, 0
      %v1924 = vsel %vm474, %v1901, 0
      %1926 = vmatpush.msra.mxu0 0.0
      %1927 = vmatpush.msra.mxu0 0.0
      %1928 = vmatpush.msra.mxu0 0.0
      %1929 = vmatpush.msra.mxu0 0.0
      %1930 = vmatpush.msra.mxu0 0.0
      %1931 = vmatpush.msra.mxu0 0.0
      %1932 = vmatpush.msra.mxu0 0.0
      %1933 = vmatpush.msra.mxu0 0.0
      %1934 = vmatpush.msra.mxu0 0.0
      %1935 = vmatpush.msra.mxu0 0.0
      %1936 = vmatpush.msra.mxu0 0.0
      %1937 = vmatpush.msra.mxu0 0.0
      %1938 = vmatpush.msra.mxu0 0.0
      %1939 = vmatpush.msra.mxu0 %v501
      %1940 = vmatpush.msra.mxu0 %v232
      %1941 = vmatpush.msra.mxu0 %v231
      %1942 = vmatmul.f32.gmra.mxu0 %v1903
      %v1943 = vpop.f32.mrf.mxu0
      %v1944 = vadd.f32 %v472, %v1943
      %1945 = vmatmul.f32.gmra.mxu0 %v1906
      %v1946 = vpop.f32.mrf.mxu0
      %v1947 = vadd.f32 %v472, %v1946
      %1948 = vmatmul.f32.gmra.mxu0 %v1909
      %v1949 = vpop.f32.mrf.mxu0
      %v1950 = vadd.f32 %v472, %v1949
      %1951 = vmatmul.f32.gmra.mxu0 %v1912
      %v1952 = vpop.f32.mrf.mxu0
      %v1953 = vadd.f32 %v472, %v1952
      %1954 = vmatmul.f32.gmra.mxu0 %v1915
      %v1955 = vpop.f32.mrf.mxu0
      %v1956 = vadd.f32 %v472, %v1955
      %1957 = vmatmul.f32.gmra.mxu0 %v1918
      %v1958 = vpop.f32.mrf.mxu0
      %v1959 = vadd.f32 %v472, %v1958
      %1960 = vmatmul.f32.gmra.mxu0 %v1921
      %v1961 = vpop.f32.mrf.mxu0
      %v1962 = vadd.f32 %v472, %v1961
      %1963 = vmatmul.f32.gmra.mxu0 %v1924
      %v1964 = vpop.f32.mrf.mxu0
      %v1965 = vadd.f32 %v472, %v1964
      %1966 = vdwg.mxu0
      %1967 = vst.msk [vmem:[%s226 + $0x180] sm:$0xff] %vm544, %v1944
      %1968 = vst.msk [vmem:[%s226 + $0x188] sm:$0xff] %vm544, %v1947
      %1969 = vst.msk [vmem:[%s226 + $0x190] sm:$0xff] %vm544, %v1950
      %1970 = vst.msk [vmem:[%s226 + $0x198] sm:$0xff] %vm544, %v1953
      %1971 = vst.msk [vmem:[%s226 + $0x1a0] sm:$0xff] %vm544, %v1956
      %1972 = vst.msk [vmem:[%s226 + $0x1a8] sm:$0xff] %vm544, %v1959
      %1973 = vst.msk [vmem:[%s226 + $0x1b0] sm:$0xff] %vm544, %v1962
      %1974 = vst.msk [vmem:[%s226 + $0x1b8] sm:$0xff] %vm544, %v1965
      %v1975 = vperm.slane %v291, 0
      %v1976 = vsub.f32 %v291, %v1975
      %v1977 = vsub.f32 %v292, %v1975
      %v1978 = vsub.f32 %v293, %v1975
      %v1979 = vsub.f32 %v294, %v1975
      %v1980 = vsub.f32 %v295, %v1975
      %v1981 = vsub.f32 %v296, %v1975
      %v1982 = vsub.f32 %v297, %v1975
      %v1983 = vsub.f32 %v298, %v1975
      %v1984 = vsel %vm308, %v1976, 0.0
      %v1985 = vsel %vm308, %v1977, 0.0
      %v1986 = vadd.f32 %v1984, %v1985
      %v1987 = vsel %vm308, %v1978, 0.0
      %v1988 = vadd.f32 %v1986, %v1987
      %v1989 = vsel %vm308, %v1979, 0.0
      %v1990 = vadd.f32 %v1988, %v1989
      %v1991 = vsel %vm308, %v1980, 0.0
      %v1992 = vadd.f32 %v1990, %v1991
      %v1993 = vsel %vm308, %v1981, 0.0
      %v1994 = vadd.f32 %v1992, %v1993
      %v1995 = vsel %vm308, %v1982, 0.0
      %v1996 = vadd.f32 %v1994, %v1995
      %v1997 = vsel %vm308, %v1983, 0.0
      %v1998 = vadd.f32 %v1996, %v1997
      %v1999 = vrot.slane %v1998, 4
      %v2000 = vadd.f32 %v1998, %v1999
      %v2001 = vrot.slane %v2000, 2
      %v2002 = vadd.f32 %v2000, %v2001
      %v2003 = vrot.slane %v2002, 1
      %v2004 = vadd.f32 %v2002, %v2003
      %v2005 = vmul.f32 %v1976, %v1976
      %v2006 = vmul.f32 %v1977, %v1977
      %v2007 = vmul.f32 %v1978, %v1978
      %v2008 = vmul.f32 %v1979, %v1979
      %v2009 = vmul.f32 %v1980, %v1980
      %v2010 = vmul.f32 %v1981, %v1981
      %v2011 = vmul.f32 %v1982, %v1982
      %v2012 = vmul.f32 %v1983, %v1983
      %v2013 = vsel %vm308, %v2005, 0.0
      %v2014 = vsel %vm308, %v2006, 0.0
      %v2015 = vadd.f32 %v2013, %v2014
      %v2016 = vsel %vm308, %v2007, 0.0
      %v2017 = vadd.f32 %v2015, %v2016
      %v2018 = vsel %vm308, %v2008, 0.0
      %v2019 = vadd.f32 %v2017, %v2018
      %v2020 = vsel %vm308, %v2009, 0.0
      %v2021 = vadd.f32 %v2019, %v2020
      %v2022 = vsel %vm308, %v2010, 0.0
      %v2023 = vadd.f32 %v2021, %v2022
      %v2024 = vsel %vm308, %v2011, 0.0
      %v2025 = vadd.f32 %v2023, %v2024
      %v2026 = vsel %vm308, %v2012, 0.0
      %v2027 = vadd.f32 %v2025, %v2026
      %v2028 = vrot.slane %v2027, 4
      %v2029 = vadd.f32 %v2027, %v2028
      %v2030 = vrot.slane %v2029, 2
      %v2031 = vadd.f32 %v2029, %v2030
      %v2032 = vrot.slane %v2031, 1
      %v2033 = vadd.f32 %v2031, %v2032
      %v2034 = vmul.f32 %v2004, 0.015625
      %v2035 = vmul.f32 %v2033, 0.015625
      %v2036 = vmul.f32 %v2034, %v2034
      %v2037 = vsub.f32 %v2035, %v2036
      %v2038 = vmax.f32 %v2037, 0.0
      %v2039 = vadd.f32 %v2038, 1e-05
      %v2040 = vrsqrt.pop %v2039
      %v2041 = vmul.f32 %v2040, %v2039
      %v2042 = vmul.f32 %v2041, %v2040
      %v2043 = vmul.f32 0.5, %v2042
      %v2044 = vsub.f32 1.5, %v2043
      %v2045 = vmul.f32 %v2040, %v2044
      %vm2046 = vweird.f32 %v2039
      %vm2047 = vweird.f32 %v2040
      %vm2048 = vmor %vm2046, %vm2047
      %v2049 = vsel %vm2048, %v2040, %v2045
      %v2050 = vsub.f32 %v1976, %v2034
      %v2051 = vsub.f32 %v1977, %v2034
      %v2052 = vsub.f32 %v1978, %v2034
      %v2053 = vsub.f32 %v1979, %v2034
      %v2054 = vsub.f32 %v1980, %v2034
      %v2055 = vsub.f32 %v1981, %v2034
      %v2056 = vsub.f32 %v1982, %v2034
      %v2057 = vsub.f32 %v1983, %v2034
      %v2058 = vmul.f32 %v2050, %v2049
      %v2059 = vmul.f32 %v2051, %v2049
      %v2060 = vmul.f32 %v2052, %v2049
      %v2061 = vmul.f32 %v2053, %v2049
      %v2062 = vmul.f32 %v2054, %v2049
      %v2063 = vmul.f32 %v2055, %v2049
      %v2064 = vmul.f32 %v2056, %v2049
      %v2065 = vmul.f32 %v2057, %v2049
      %v2067 = vsel %vm308, %v2058, 0
      %v2070 = vsel %vm308, %v2059, 0
      %v2073 = vsel %vm308, %v2060, 0
      %v2076 = vsel %vm308, %v2061, 0
      %v2079 = vsel %vm308, %v2062, 0
      %v2082 = vsel %vm308, %v2063, 0
      %v2085 = vsel %vm308, %v2064, 0
      %v2088 = vsel %vm308, %v2065, 0
      %2090 = vmatpush.msra.mxu0 0.0
      %2091 = vmatpush.msra.mxu0 0.0
      %2092 = vmatpush.msra.mxu0 0.0
      %2093 = vmatpush.msra.mxu0 0.0
      %2094 = vmatpush.msra.mxu0 0.0
      %2095 = vmatpush.msra.mxu0 0.0
      %2096 = vmatpush.msra.mxu0 0.0
      %2097 = vmatpush.msra.mxu0 0.0
      %2098 = vmatpush.msra.mxu0 0.0
      %2099 = vmatpush.msra.mxu0 0.0
      %2100 = vmatpush.msra.mxu0 0.0
      %2101 = vmatpush.msra.mxu0 0.0
      %2102 = vmatpush.msra.mxu0 0.0
      %2103 = vmatpush.msra.mxu0 0.0
      %2104 = vmatpush.msra.mxu0 %v420
      %2105 = vmatpush.msra.mxu0 %v228
      %2106 = vmatmul.f32.gmra.mxu0 %v2067
      %v2107 = vpop.f32.mrf.mxu0
      %v2108 = vadd.f32 %v392, %v2107
      %2109 = vmatmul.f32.gmra.mxu0 %v2070
      %v2110 = vpop.f32.mrf.mxu0
      %v2111 = vadd.f32 %v392, %v2110
      %2112 = vmatmul.f32.gmra.mxu0 %v2073
      %v2113 = vpop.f32.mrf.mxu0
      %v2114 = vadd.f32 %v392, %v2113
      %2115 = vmatmul.f32.gmra.mxu0 %v2076
      %v2116 = vpop.f32.mrf.mxu0
      %v2117 = vadd.f32 %v392, %v2116
      %2118 = vmatmul.f32.gmra.mxu0 %v2079
      %v2119 = vpop.f32.mrf.mxu0
      %v2120 = vadd.f32 %v392, %v2119
      %2121 = vmatmul.f32.gmra.mxu0 %v2082
      %v2122 = vpop.f32.mrf.mxu0
      %v2123 = vadd.f32 %v392, %v2122
      %2124 = vmatmul.f32.gmra.mxu0 %v2085
      %v2125 = vpop.f32.mrf.mxu0
      %v2126 = vadd.f32 %v392, %v2125
      %2127 = vmatmul.f32.gmra.mxu0 %v2088
      %v2128 = vpop.f32.mrf.mxu0
      %v2129 = vadd.f32 %v392, %v2128
      %2130 = vdwg.mxu0
      %v2131 = vmax.f32 %v2108, 0.0
      %v2132 = vmax.f32 %v2111, 0.0
      %v2133 = vmax.f32 %v2114, 0.0
      %v2134 = vmax.f32 %v2117, 0.0
      %v2135 = vmax.f32 %v2120, 0.0
      %v2136 = vmax.f32 %v2123, 0.0
      %v2137 = vmax.f32 %v2126, 0.0
      %v2138 = vmax.f32 %v2129, 0.0
      %v2140 = vsel %vm474, %v2131, 0
      %v2143 = vsel %vm474, %v2132, 0
      %v2146 = vsel %vm474, %v2133, 0
      %v2149 = vsel %vm474, %v2134, 0
      %v2152 = vsel %vm474, %v2135, 0
      %v2155 = vsel %vm474, %v2136, 0
      %v2158 = vsel %vm474, %v2137, 0
      %v2161 = vsel %vm474, %v2138, 0
      %2163 = vmatpush.msra.mxu0 0.0
      %2164 = vmatpush.msra.mxu0 0.0
      %2165 = vmatpush.msra.mxu0 0.0
      %2166 = vmatpush.msra.mxu0 0.0
      %2167 = vmatpush.msra.mxu0 0.0
      %2168 = vmatpush.msra.mxu0 0.0
      %2169 = vmatpush.msra.mxu0 0.0
      %2170 = vmatpush.msra.mxu0 0.0
      %2171 = vmatpush.msra.mxu0 0.0
      %2172 = vmatpush.msra.mxu0 0.0
      %2173 = vmatpush.msra.mxu0 0.0
      %2174 = vmatpush.msra.mxu0 0.0
      %2175 = vmatpush.msra.mxu0 0.0
      %2176 = vmatpush.msra.mxu0 %v501
      %2177 = vmatpush.msra.mxu0 %v232
      %2178 = vmatpush.msra.mxu0 %v231
      %2179 = vmatmul.f32.gmra.mxu0 %v2140
      %v2180 = vpop.f32.mrf.mxu0
      %v2181 = vadd.f32 %v472, %v2180
      %2182 = vmatmul.f32.gmra.mxu0 %v2143
      %v2183 = vpop.f32.mrf.mxu0
      %v2184 = vadd.f32 %v472, %v2183
      %2185 = vmatmul.f32.gmra.mxu0 %v2146
      %v2186 = vpop.f32.mrf.mxu0
      %v2187 = vadd.f32 %v472, %v2186
      %2188 = vmatmul.f32.gmra.mxu0 %v2149
      %v2189 = vpop.f32.mrf.mxu0
      %v2190 = vadd.f32 %v472, %v2189
      %2191 = vmatmul.f32.gmra.mxu0 %v2152
      %v2192 = vpop.f32.mrf.mxu0
      %v2193 = vadd.f32 %v472, %v2192
      %2194 = vmatmul.f32.gmra.mxu0 %v2155
      %v2195 = vpop.f32.mrf.mxu0
      %v2196 = vadd.f32 %v472, %v2195
      %2197 = vmatmul.f32.gmra.mxu0 %v2158
      %v2198 = vpop.f32.mrf.mxu0
      %v2199 = vadd.f32 %v472, %v2198
      %2200 = vmatmul.f32.gmra.mxu0 %v2161
      %v2201 = vpop.f32.mrf.mxu0
      %v2202 = vadd.f32 %v472, %v2201
      %2203 = vdwg.mxu0
      %2204 = vst.msk [vmem:[%s226 + $0x1c0] sm:$0xff] %vm544, %v2181
      %2205 = vst.msk [vmem:[%s226 + $0x1c8] sm:$0xff] %vm544, %v2184
      %2206 = vst.msk [vmem:[%s226 + $0x1d0] sm:$0xff] %vm544, %v2187
      %2207 = vst.msk [vmem:[%s226 + $0x1d8] sm:$0xff] %vm544, %v2190
      %2208 = vst.msk [vmem:[%s226 + $0x1e0] sm:$0xff] %vm544, %v2193
      %2209 = vst.msk [vmem:[%s226 + $0x1e8] sm:$0xff] %vm544, %v2196
      %2210 = vst.msk [vmem:[%s226 + $0x1f0] sm:$0xff] %vm544, %v2199
      %2211 = vst.msk [vmem:[%s226 + $0x1f8] sm:$0xff] %vm544, %v2202
      %s2212 = smul.u32 64, %s16
      %p2213 = scmp.lt.s32.totalorder %s2212, 127
      %s2214 = scalar_select %p2213, %s2212, 127
      %s2215 = smul.addr %s2214, 8
      %s2216 = scalar_lea.vmem %s5, %s2215
      // Predicated region
      $region41: #{core.1} parent=39 // pred_check
        %p2217 = pneg %p144
      $region42: #{core.1} parent=39 // pred_check_branch
        %2219 = sbr.rel (%p2217) target = $region44
      $region43: #{core.1} parent=39 // pred_region
        %s2220 = smul.u32 64, %s16
      $region44: #{core.1} parent=39 // pred_fallthru
        _
    $region40: #{core.1} parent=5 // pred_fallthru
      _
    %p2221 = scmp.le.s32.totalorder 2, %s11
    // Predicated region
    $region45: #{core.1} parent=5 // pred_check
      %p2222 = pneg %p2221
    $region46: #{core.1} parent=5 // pred_check_branch
      %2224 = sbr.rel (%p2222) target = $region48
    $region47: #{core.1} parent=5 // pred_region
      %s2225 = ssub.s32 %s11, 2
      // Predicated region
      $region49: #{core.1} parent=47 // pred_check
        %p2226 = pneg %p150
      $region50: #{core.1} parent=47 // pred_check_branch
        %2228 = sbr.rel (%p2226) target = $region52
      $region51: #{core.1} parent=47 // pred_region
        %s2229 = smul.u32 64, %s17
        %p2230 = scmp.lt.s32.totalorder %s2229, 127
        %s2231 = scalar_select %p2230, %s2229, 127
        %s2232 = smul.addr %s2231, 8
        %s2233 = scalar_lea.vmem %s5, %s2232
      $region52: #{core.1} parent=47 // pred_fallthru
        _
    $region48: #{core.1} parent=5 // pred_fallthru
      _
  $region6: #{core.1} parent=0 // loop_footer
    %s15 = sadd.s32 1, %s11
  $region7: #{core.1} parent=0 // loop_footer_branch
    %10 = sbr.rel target = $region3
  $region8: #{core.1} parent=0 // loop_exit
    _

</llo_original>
